<compile_context>
chip_gen: v6e
topology: v6e:2x2x1
jax: 0.10.0
libtpu: 0.0.40
codegen_flags: <defaults>
</compile_context>

<pallas_src>
import jax
import jax.numpy as jnp
from jax.experimental import pallas as pl
from jax.experimental.pallas import tpu as pltpu

# ---- small, forward-consistent shapes ----
BATCH = 4
DATA_SIZE = 32
KSIZE = 11
CONV_C = 10
L_OUT = DATA_SIZE - KSIZE + 1          # data_size - 10 = 22
FLAT = CONV_C * L_OUT                  # 220
LATENT = 32
HIDDEN = 256
NUM_CLASSES = 8


def _round_up(n, m):
    return ((n + m - 1) // m) * m


LATENT_PAD = _round_up(LATENT, 128)        # 128
OUT_PAD = _round_up(NUM_CLASSES, 128)      # 128


def net_kernel(x_ref, wc_ref, bc_ref, w1_ref, b1_ref, w2_ref, b2_ref,
               w3_ref, b3_ref, out_ref):
    x = x_ref[...]                       # (B_pad, DATA_SIZE) f32
    wc = wc_ref[...]                     # (CONV_C, KSIZE)
    bsz = x.shape[0]

    # --- Conv1d(1, CONV_C, kernel_size=KSIZE) + ReLU ------------------------
    # conv[c, b, t] = sum_k wc[c, k] * x[b, t + k] + bc[c]
    # Vectorized across channels: KSIZE vector FMAs on a (C, B, L_OUT) tile.
    acc = jnp.zeros((CONV_C, bsz, L_OUT), jnp.float32)
    for k in range(KSIZE):
        xwin = x[:, k:k + L_OUT]                           # (B, L_OUT)
        wck = wc[:, k:k + 1]                               # (C, 1)
        acc = acc + xwin[None, :, :] * wck[:, :, None]     # (C, B, L_OUT)
    conv = jnp.maximum(acc + bc_ref[...][:, :, None], 0.0)

    # --- Flatten + Linear(FLAT -> LATENT) as a channel-batched matmul -------
    # torch flatten: flat[b, c*L_OUT + t] = conv[b, c, t]
    # w1_ref[c, t, l] = W1[l, c*L_OUT + t]  =>  h1 = sum_c conv[c] @ w1_ref[c]
    h1c = jax.lax.dot_general(
        conv, w1_ref[...],
        dimension_numbers=(((2,), (1,)), ((0,), (0,))),
        preferred_element_type=jnp.float32)                # (C, B, LATENT_PAD)
    h1 = jnp.sum(h1c, axis=0) + b1_ref[...]                # (B, LATENT_PAD)
    # TODO(synk): Dropout implemented in eval mode only (identity); no
    # training-mode stochastic masking.
    h1 = jnp.maximum(h1, 0.0)

    # --- reg_layer: Linear(LATENT -> HIDDEN)  (vib=False) -------------------
    h2 = jnp.dot(h1, w2_ref[...],
                 preferred_element_type=jnp.float32) + b2_ref[...]   # (B, HIDDEN)

    # --- net2: ReLU -> Linear(HIDDEN -> NUM_CLASSES) ------------------------
    h3 = jnp.maximum(h2, 0.0)
    out_ref[...] = (jnp.dot(h3, w3_ref[...],
                            preferred_element_type=jnp.float32)
                    + b3_ref[...])                                    # (B, OUT_PAD)


def _prep_params(params):
    """Pre-transpose / lane-pad torch-layout weights (outside the kernel)."""
    wc, bc, w1, b1, w2, b2, w3, b3 = params
    f32 = jnp.float32

    wc_p = wc.astype(f32)                                    # (C, K)
    bc_p = bc.reshape(CONV_C, 1).astype(f32)                 # (C, 1)

    # Linear(FLAT, LATENT): torch (LATENT, FLAT) -> (C, L_OUT, LATENT_PAD),
    # padded output columns are zero so they contribute nothing downstream.
    w1_3d = w1.T.reshape(CONV_C, L_OUT, LATENT).astype(f32)
    w1_p = jnp.zeros((CONV_C, L_OUT, LATENT_PAD), f32).at[:, :, :LATENT].set(w1_3d)
    b1_p = jnp.zeros((1, LATENT_PAD), f32).at[:, :LATENT].set(b1[None, :].astype(f32))

    # reg_layer Linear(LATENT, HIDDEN): torch (HIDDEN, LATENT) -> (LATENT_PAD, HIDDEN).
    w2_p = jnp.zeros((LATENT_PAD, HIDDEN), f32).at[:LATENT, :].set(w2.T.astype(f32))
    b2_p = b2.reshape(1, HIDDEN).astype(f32)

    # Linear(HIDDEN, NUM_CLASSES): torch (NC, HIDDEN) -> (HIDDEN, OUT_PAD).
    w3_p = jnp.zeros((HIDDEN, OUT_PAD), f32).at[:, :NUM_CLASSES].set(w3.T.astype(f32))
    b3_p = jnp.zeros((1, OUT_PAD), f32).at[:, :NUM_CLASSES].set(b3[None, :].astype(f32))

    return wc_p, bc_p, w1_p, b1_p, w2_p, b2_p, w3_p, b3_p


def net_forward(x, params):
    b = x.shape[0]
    b_pad = max(_round_up(b, 8), 8)            # full sublane tiles
    x_p = jnp.zeros((b_pad, DATA_SIZE), jnp.float32).at[:b, :].set(
        x.astype(jnp.float32))

    prepped = _prep_params(params)

    vmem = pl.BlockSpec(memory_space=pltpu.MemorySpace.VMEM)
    logits_pad = pl.pallas_call(
        net_kernel,
        out_shape=jax.ShapeDtypeStruct((b_pad, OUT_PAD), jnp.float32),
        in_specs=[vmem] * 9,
        out_specs=vmem,
    )(x_p, *prepped)

    # .squeeze() is a no-op for (B>1, num_classes>1); kl = Tensor([0]).mean().
    logits = logits_pad[:b, :NUM_CLASSES]
    kl_mean = jnp.float32(0.0)
    return logits, kl_mean


def init_params(key):
    """Deterministic init mimicking PyTorch default U(-1/sqrt(fan_in), +), torch layout."""
    ks = jax.random.split(key, 8)

    def unif(k, shape, fan_in):
        bound = 1.0 / jnp.sqrt(jnp.float32(fan_in))
        return jax.random.uniform(k, shape, jnp.float32, -bound, bound)

    wc = unif(ks[0], (CONV_C, KSIZE), 1 * KSIZE)        # Conv1d weight (C_out, C_in*K)
    bc = unif(ks[1], (CONV_C,), 1 * KSIZE)
    w1 = unif(ks[2], (LATENT, FLAT), FLAT)              # Linear(FLAT, LATENT)
    b1 = unif(ks[3], (LATENT,), FLAT)
    w2 = unif(ks[4], (HIDDEN, LATENT), LATENT)          # reg_layer Linear(LATENT, 256)
    b2 = unif(ks[5], (HIDDEN,), LATENT)
    w3 = unif(ks[6], (NUM_CLASSES, HIDDEN), HIDDEN)     # Linear(256, num_classes)
    b3 = unif(ks[7], (NUM_CLASSES,), HIDDEN)
    return (wc, bc, w1, b1, w2, b2, w3, b3)


if __name__ == "__main__":
    key = jax.random.PRNGKey(0)
    k_x, k_p = jax.random.split(key)
    x = jax.random.normal(k_x, (BATCH, DATA_SIZE), jnp.float32)
    params = init_params(k_p)

    logits, kl = jax.jit(net_forward)(x, params)
    jax.block_until_ready(logits)
    jax.block_until_ready(kl)

    assert logits.shape == (BATCH, NUM_CLASSES)
    assert kl.shape == ()
    print("KERNEL_OK")
</pallas_src>

<mosaic_0001>
module attributes {stable_mosaic.version = 11 : i64} {
  func.func @net_kernel(%arg0: memref<8x32xf32, #tpu.memory_space<vmem>>, %arg1: memref<10x11xf32, #tpu.memory_space<vmem>>, %arg2: memref<10x1xf32, #tpu.memory_space<vmem>>, %arg3: memref<10x22x128xf32, #tpu.memory_space<vmem>>, %arg4: memref<1x128xf32, #tpu.memory_space<vmem>>, %arg5: memref<128x256xf32, #tpu.memory_space<vmem>>, %arg6: memref<1x256xf32, #tpu.memory_space<vmem>>, %arg7: memref<256x128xf32, #tpu.memory_space<vmem>>, %arg8: memref<1x128xf32, #tpu.memory_space<vmem>>, %arg9: memref<8x128xf32, #tpu.memory_space<vmem>>) attributes {dimension_semantics = [], scalar_prefetch = 0 : i64, scratch_operands = 0 : i64, tpu.core_type = #tpu.core_type<tc>} {
    %c0 = arith.constant 0 : index
    %c0_0 = arith.constant 0 : index
    %0 = vector.load %arg0[%c0, %c0_0] : memref<8x32xf32, #tpu.memory_space<vmem>>, vector<8x32xf32>
    %c0_1 = arith.constant 0 : index
    %c0_2 = arith.constant 0 : index
    %1 = vector.load %arg1[%c0_1, %c0_2] : memref<10x11xf32, #tpu.memory_space<vmem>>, vector<10x11xf32>
    %cst = arith.constant 0.000000e+00 : f32
    %2 = vector.broadcast %cst : f32 to vector<10x8x22xf32>
    %3 = vector.extract_strided_slice %0 {offsets = [0, 0], sizes = [8, 22], strides = [1, 1]} : vector<8x32xf32> to vector<8x22xf32>
    %4 = vector.extract_strided_slice %1 {offsets = [0, 0], sizes = [10, 1], strides = [1, 1]} : vector<10x11xf32> to vector<10x1xf32>
    %5 = vector.shape_cast %3 : vector<8x22xf32> to vector<1x8x22xf32>
    %6 = vector.shape_cast %4 : vector<10x1xf32> to vector<10x1x1xf32>
    %7 = vector.broadcast %5 : vector<1x8x22xf32> to vector<10x8x22xf32>
    %8 = vector.broadcast %6 : vector<10x1x1xf32> to vector<10x8x22xf32>
    %9 = arith.mulf %7, %8 : vector<10x8x22xf32>
    %10 = arith.addf %2, %9 : vector<10x8x22xf32>
    %11 = vector.extract_strided_slice %0 {offsets = [0, 1], sizes = [8, 22], strides = [1, 1]} : vector<8x32xf32> to vector<8x22xf32>
    %12 = vector.extract_strided_slice %1 {offsets = [0, 1], sizes = [10, 1], strides = [1, 1]} : vector<10x11xf32> to vector<10x1xf32>
    %13 = vector.shape_cast %11 : vector<8x22xf32> to vector<1x8x22xf32>
    %14 = vector.shape_cast %12 : vector<10x1xf32> to vector<10x1x1xf32>
    %15 = vector.broadcast %13 : vector<1x8x22xf32> to vector<10x8x22xf32>
    %16 = vector.broadcast %14 : vector<10x1x1xf32> to vector<10x8x22xf32>
    %17 = arith.mulf %15, %16 : vector<10x8x22xf32>
    %18 = arith.addf %10, %17 : vector<10x8x22xf32>
    %19 = vector.extract_strided_slice %0 {offsets = [0, 2], sizes = [8, 22], strides = [1, 1]} : vector<8x32xf32> to vector<8x22xf32>
    %20 = vector.extract_strided_slice %1 {offsets = [0, 2], sizes = [10, 1], strides = [1, 1]} : vector<10x11xf32> to vector<10x1xf32>
    %21 = vector.shape_cast %19 : vector<8x22xf32> to vector<1x8x22xf32>
    %22 = vector.shape_cast %20 : vector<10x1xf32> to vector<10x1x1xf32>
    %23 = vector.broadcast %21 : vector<1x8x22xf32> to vector<10x8x22xf32>
    %24 = vector.broadcast %22 : vector<10x1x1xf32> to vector<10x8x22xf32>
    %25 = arith.mulf %23, %24 : vector<10x8x22xf32>
    %26 = arith.addf %18, %25 : vector<10x8x22xf32>
    %27 = vector.extract_strided_slice %0 {offsets = [0, 3], sizes = [8, 22], strides = [1, 1]} : vector<8x32xf32> to vector<8x22xf32>
    %28 = vector.extract_strided_slice %1 {offsets = [0, 3], sizes = [10, 1], strides = [1, 1]} : vector<10x11xf32> to vector<10x1xf32>
    %29 = vector.shape_cast %27 : vector<8x22xf32> to vector<1x8x22xf32>
    %30 = vector.shape_cast %28 : vector<10x1xf32> to vector<10x1x1xf32>
    %31 = vector.broadcast %29 : vector<1x8x22xf32> to vector<10x8x22xf32>
    %32 = vector.broadcast %30 : vector<10x1x1xf32> to vector<10x8x22xf32>
    %33 = arith.mulf %31, %32 : vector<10x8x22xf32>
    %34 = arith.addf %26, %33 : vector<10x8x22xf32>
    %35 = vector.extract_strided_slice %0 {offsets = [0, 4], sizes = [8, 22], strides = [1, 1]} : vector<8x32xf32> to vector<8x22xf32>
    %36 = vector.extract_strided_slice %1 {offsets = [0, 4], sizes = [10, 1], strides = [1, 1]} : vector<10x11xf32> to vector<10x1xf32>
    %37 = vector.shape_cast %35 : vector<8x22xf32> to vector<1x8x22xf32>
    %38 = vector.shape_cast %36 : vector<10x1xf32> to vector<10x1x1xf32>
    %39 = vector.broadcast %37 : vector<1x8x22xf32> to vector<10x8x22xf32>
    %40 = vector.broadcast %38 : vector<10x1x1xf32> to vector<10x8x22xf32>
    %41 = arith.mulf %39, %40 : vector<10x8x22xf32>
    %42 = arith.addf %34, %41 : vector<10x8x22xf32>
    %43 = vector.extract_strided_slice %0 {offsets = [0, 5], sizes = [8, 22], strides = [1, 1]} : vector<8x32xf32> to vector<8x22xf32>
    %44 = vector.extract_strided_slice %1 {offsets = [0, 5], sizes = [10, 1], strides = [1, 1]} : vector<10x11xf32> to vector<10x1xf32>
    %45 = vector.shape_cast %43 : vector<8x22xf32> to vector<1x8x22xf32>
    %46 = vector.shape_cast %44 : vector<10x1xf32> to vector<10x1x1xf32>
    %47 = vector.broadcast %45 : vector<1x8x22xf32> to vector<10x8x22xf32>
    %48 = vector.broadcast %46 : vector<10x1x1xf32> to vector<10x8x22xf32>
    %49 = arith.mulf %47, %48 : vector<10x8x22xf32>
    %50 = arith.addf %42, %49 : vector<10x8x22xf32>
    %51 = vector.extract_strided_slice %0 {offsets = [0, 6], sizes = [8, 22], strides = [1, 1]} : vector<8x32xf32> to vector<8x22xf32>
    %52 = vector.extract_strided_slice %1 {offsets = [0, 6], sizes = [10, 1], strides = [1, 1]} : vector<10x11xf32> to vector<10x1xf32>
    %53 = vector.shape_cast %51 : vector<8x22xf32> to vector<1x8x22xf32>
    %54 = vector.shape_cast %52 : vector<10x1xf32> to vector<10x1x1xf32>
    %55 = vector.broadcast %53 : vector<1x8x22xf32> to vector<10x8x22xf32>
    %56 = vector.broadcast %54 : vector<10x1x1xf32> to vector<10x8x22xf32>
    %57 = arith.mulf %55, %56 : vector<10x8x22xf32>
    %58 = arith.addf %50, %57 : vector<10x8x22xf32>
    %59 = vector.extract_strided_slice %0 {offsets = [0, 7], sizes = [8, 22], strides = [1, 1]} : vector<8x32xf32> to vector<8x22xf32>
    %60 = vector.extract_strided_slice %1 {offsets = [0, 7], sizes = [10, 1], strides = [1, 1]} : vector<10x11xf32> to vector<10x1xf32>
    %61 = vector.shape_cast %59 : vector<8x22xf32> to vector<1x8x22xf32>
    %62 = vector.shape_cast %60 : vector<10x1xf32> to vector<10x1x1xf32>
    %63 = vector.broadcast %61 : vector<1x8x22xf32> to vector<10x8x22xf32>
    %64 = vector.broadcast %62 : vector<10x1x1xf32> to vector<10x8x22xf32>
    %65 = arith.mulf %63, %64 : vector<10x8x22xf32>
    %66 = arith.addf %58, %65 : vector<10x8x22xf32>
    %67 = vector.extract_strided_slice %0 {offsets = [0, 8], sizes = [8, 22], strides = [1, 1]} : vector<8x32xf32> to vector<8x22xf32>
    %68 = vector.extract_strided_slice %1 {offsets = [0, 8], sizes = [10, 1], strides = [1, 1]} : vector<10x11xf32> to vector<10x1xf32>
    %69 = vector.shape_cast %67 : vector<8x22xf32> to vector<1x8x22xf32>
    %70 = vector.shape_cast %68 : vector<10x1xf32> to vector<10x1x1xf32>
    %71 = vector.broadcast %69 : vector<1x8x22xf32> to vector<10x8x22xf32>
    %72 = vector.broadcast %70 : vector<10x1x1xf32> to vector<10x8x22xf32>
    %73 = arith.mulf %71, %72 : vector<10x8x22xf32>
    %74 = arith.addf %66, %73 : vector<10x8x22xf32>
    %75 = vector.extract_strided_slice %0 {offsets = [0, 9], sizes = [8, 22], strides = [1, 1]} : vector<8x32xf32> to vector<8x22xf32>
    %76 = vector.extract_strided_slice %1 {offsets = [0, 9], sizes = [10, 1], strides = [1, 1]} : vector<10x11xf32> to vector<10x1xf32>
    %77 = vector.shape_cast %75 : vector<8x22xf32> to vector<1x8x22xf32>
    %78 = vector.shape_cast %76 : vector<10x1xf32> to vector<10x1x1xf32>
    %79 = vector.broadcast %77 : vector<1x8x22xf32> to vector<10x8x22xf32>
    %80 = vector.broadcast %78 : vector<10x1x1xf32> to vector<10x8x22xf32>
    %81 = arith.mulf %79, %80 : vector<10x8x22xf32>
    %82 = arith.addf %74, %81 : vector<10x8x22xf32>
    %83 = vector.extract_strided_slice %0 {offsets = [0, 10], sizes = [8, 22], strides = [1, 1]} : vector<8x32xf32> to vector<8x22xf32>
    %84 = vector.extract_strided_slice %1 {offsets = [0, 10], sizes = [10, 1], strides = [1, 1]} : vector<10x11xf32> to vector<10x1xf32>
    %85 = vector.shape_cast %83 : vector<8x22xf32> to vector<1x8x22xf32>
    %86 = vector.shape_cast %84 : vector<10x1xf32> to vector<10x1x1xf32>
    %87 = vector.broadcast %85 : vector<1x8x22xf32> to vector<10x8x22xf32>
    %88 = vector.broadcast %86 : vector<10x1x1xf32> to vector<10x8x22xf32>
    %89 = arith.mulf %87, %88 : vector<10x8x22xf32>
    %90 = arith.addf %82, %89 : vector<10x8x22xf32>
    %c0_3 = arith.constant 0 : index
    %c0_4 = arith.constant 0 : index
    %91 = vector.load %arg2[%c0_3, %c0_4] : memref<10x1xf32, #tpu.memory_space<vmem>>, vector<10x1xf32>
    %92 = vector.shape_cast %91 : vector<10x1xf32> to vector<10x1x1xf32>
    %93 = vector.broadcast %92 : vector<10x1x1xf32> to vector<10x8x22xf32>
    %94 = arith.addf %90, %93 : vector<10x8x22xf32>
    %cst_5 = arith.constant 0.000000e+00 : f32
    %95 = vector.broadcast %cst_5 : f32 to vector<10x8x22xf32>
    %96 = arith.maximumf %94, %95 : vector<10x8x22xf32>
    %c0_6 = arith.constant 0 : index
    %c0_7 = arith.constant 0 : index
    %c0_8 = arith.constant 0 : index
    %97 = vector.load %arg3[%c0_6, %c0_7, %c0_8] : memref<10x22x128xf32, #tpu.memory_space<vmem>>, vector<10x22x128xf32>
    %cst_9 = arith.constant dense<0.000000e+00> : vector<10x8x128xf32>
    %98 = tpu.matmul %96, %97, %cst_9 {dimension_numbers = #tpu.dot_dimension_numbers<[2], [1], [1], [2], [0, 0, 0, 1, 1, 2], [0], [0]>} : vector<10x8x22xf32>, vector<10x22x128xf32>, vector<10x8x128xf32> -> vector<10x8x128xf32>
    %cst_10 = arith.constant dense<0.000000e+00> : vector<8x128xf32>
    %99 = vector.multi_reduction <add>, %98, %cst_10 [0] : vector<10x8x128xf32> to vector<8x128xf32>
    %c0_11 = arith.constant 0 : index
    %c0_12 = arith.constant 0 : index
    %100 = vector.load %arg4[%c0_11, %c0_12] : memref<1x128xf32, #tpu.memory_space<vmem>>, vector<1x128xf32>
    %101 = vector.broadcast %100 : vector<1x128xf32> to vector<8x128xf32>
    %102 = arith.addf %99, %101 : vector<8x128xf32>
    %cst_13 = arith.constant 0.000000e+00 : f32
    %103 = vector.broadcast %cst_13 : f32 to vector<8x128xf32>
    %104 = arith.maximumf %102, %103 : vector<8x128xf32>
    %c0_14 = arith.constant 0 : index
    %c0_15 = arith.constant 0 : index
    %105 = vector.load %arg5[%c0_14, %c0_15] : memref<128x256xf32, #tpu.memory_space<vmem>>, vector<128x256xf32>
    %cst_16 = arith.constant dense<0.000000e+00> : vector<8x256xf32>
    %106 = tpu.matmul %104, %105, %cst_16 {dimension_numbers = #tpu.dot_dimension_numbers<[1], [0], [0], [1], [0, 0, 1, 1], [], []>} : vector<8x128xf32>, vector<128x256xf32>, vector<8x256xf32> -> vector<8x256xf32>
    %c0_17 = arith.constant 0 : index
    %c0_18 = arith.constant 0 : index
    %107 = vector.load %arg6[%c0_17, %c0_18] : memref<1x256xf32, #tpu.memory_space<vmem>>, vector<1x256xf32>
    %108 = vector.broadcast %107 : vector<1x256xf32> to vector<8x256xf32>
    %109 = arith.addf %106, %108 : vector<8x256xf32>
    %cst_19 = arith.constant 0.000000e+00 : f32
    %110 = vector.broadcast %cst_19 : f32 to vector<8x256xf32>
    %111 = arith.maximumf %109, %110 : vector<8x256xf32>
    %c0_20 = arith.constant 0 : index
    %c0_21 = arith.constant 0 : index
    %112 = vector.load %arg7[%c0_20, %c0_21] : memref<256x128xf32, #tpu.memory_space<vmem>>, vector<256x128xf32>
    %cst_22 = arith.constant dense<0.000000e+00> : vector<8x128xf32>
    %113 = tpu.matmul %111, %112, %cst_22 {dimension_numbers = #tpu.dot_dimension_numbers<[1], [0], [0], [1], [0, 0, 1, 1], [], []>} : vector<8x256xf32>, vector<256x128xf32>, vector<8x128xf32> -> vector<8x128xf32>
    %c0_23 = arith.constant 0 : index
    %c0_24 = arith.constant 0 : index
    %114 = vector.load %arg8[%c0_23, %c0_24] : memref<1x128xf32, #tpu.memory_space<vmem>>, vector<1x128xf32>
    %115 = vector.broadcast %114 : vector<1x128xf32> to vector<8x128xf32>
    %116 = arith.addf %113, %115 : vector<8x128xf32>
    %c0_25 = arith.constant 0 : index
    %c0_26 = arith.constant 0 : index
    %117 = vector.load %arg9[%c0_25, %c0_26] : memref<8x128xf32, #tpu.memory_space<vmem>>, vector<8x128xf32>
    tpu.vector_store %arg9[%c0_25, %c0_26], %116 {strides = array<i32>} : memref<8x128xf32, #tpu.memory_space<vmem>>, vector<8x128xf32>,
    return
  }
}

</mosaic_0001>

<llo_original>
// kernel: net_forward.1
$region0: #{net_forward.1}
  #allocation0 [shape = 'u32[]', space=smem, size = 0x4, offset = 0x4, fixed_abs, tag = 'smem constant byte address 0x4 - core index']
  #allocation1 [shape = 'u32[144,128]{1,0:T(1,128)}', space=vmem, size = 0x12000, scoped, tag = 'internal scratch']
  %s0 = inlined_call_operand.vmem [shape: f32[8,32], index: 0, kind: input, shape index: {}]
  %s1 = inlined_call_operand.vmem [shape: f32[10,11], index: 1, kind: input, shape index: {}]
  %s2 = inlined_call_operand.vmem [shape: f32[10,1], index: 2, kind: input, shape index: {}]
  %s3 = inlined_call_operand.vmem [shape: f32[10,22,128], index: 3, kind: input, shape index: {}]
  %s4 = inlined_call_operand.vmem [shape: f32[1,128], index: 4, kind: input, shape index: {}]
  %s5 = inlined_call_operand.vmem [shape: f32[128,256], index: 5, kind: input, shape index: {}]
  %s6 = inlined_call_operand.vmem [shape: f32[1,256], index: 6, kind: input, shape index: {}]
  %s7 = inlined_call_operand.vmem [shape: f32[256,128], index: 7, kind: input, shape index: {}]
  %s8 = inlined_call_operand.vmem [shape: f32[1,128], index: 8, kind: input, shape index: {}]
  %s9 = inlined_call_operand.vmem [shape: f32[8,128], index: 9, kind: output, shape index: {}]
  %s10 = sld [smem:[#allocation0]]
  $region46: #{net_forward.1} parent=0
    _
  %s12 = ssub.s32 1, %s10
  %s13 = scalar_select 0, %s12, %s10
  // Predicated region
  $region2: #{net_forward.1} parent=0 // pred_check
    _
  $region3: #{net_forward.1} parent=0 // pred_check_branch
    %15 = sbr.rel (0) target = $region5
  $region4: #{net_forward.1} parent=0 // pred_region
    _
  $region5: #{net_forward.1} parent=0 // pred_fallthru
    _
  // Predicated region
  $region6: #{net_forward.1} parent=0 // pred_check
    _
  $region7: #{net_forward.1} parent=0 // pred_check_branch
    %17 = sbr.rel (0) target = $region9
  $region8: #{net_forward.1} parent=0 // pred_region
    _
  $region9: #{net_forward.1} parent=0 // pred_fallthru
    _
  // Predicated region
  $region10: #{net_forward.1} parent=0 // pred_check
    _
  $region11: #{net_forward.1} parent=0 // pred_check_branch
    %19 = sbr.rel (0) target = $region13
  $region12: #{net_forward.1} parent=0 // pred_region
    _
  $region13: #{net_forward.1} parent=0 // pred_fallthru
    _
  // Predicated region
  $region14: #{net_forward.1} parent=0 // pred_check
    _
  $region15: #{net_forward.1} parent=0 // pred_check_branch
    %21 = sbr.rel (0) target = $region17
  $region16: #{net_forward.1} parent=0 // pred_region
    _
  $region17: #{net_forward.1} parent=0 // pred_fallthru
    _
  // Predicated region
  $region18: #{net_forward.1} parent=0 // pred_check
    _
  $region19: #{net_forward.1} parent=0 // pred_check_branch
    %23 = sbr.rel (0) target = $region21
  $region20: #{net_forward.1} parent=0 // pred_region
    _
  $region21: #{net_forward.1} parent=0 // pred_fallthru
    _
  // Predicated region
  $region22: #{net_forward.1} parent=0 // pred_check
    _
  $region23: #{net_forward.1} parent=0 // pred_check_branch
    %25 = sbr.rel (0) target = $region25
  $region24: #{net_forward.1} parent=0 // pred_region
    _
  $region25: #{net_forward.1} parent=0 // pred_fallthru
    _
  // Predicated region
  $region26: #{net_forward.1} parent=0 // pred_check
    _
  $region27: #{net_forward.1} parent=0 // pred_check_branch
    %27 = sbr.rel (0) target = $region29
  $region28: #{net_forward.1} parent=0 // pred_region
    _
  $region29: #{net_forward.1} parent=0 // pred_fallthru
    _
  // Predicated region
  $region30: #{net_forward.1} parent=0 // pred_check
    _
  $region31: #{net_forward.1} parent=0 // pred_check_branch
    %29 = sbr.rel (0) target = $region33
  $region32: #{net_forward.1} parent=0 // pred_region
    _
  $region33: #{net_forward.1} parent=0 // pred_fallthru
    _
  // Predicated region
  $region34: #{net_forward.1} parent=0 // pred_check
    _
  $region35: #{net_forward.1} parent=0 // pred_check_branch
    %31 = sbr.rel (0) target = $region37
  $region36: #{net_forward.1} parent=0 // pred_region
    _
  $region37: #{net_forward.1} parent=0 // pred_fallthru
    _
  %v32 = vld [vmem:[%s0] sm:$0xff]
  %v33 = vld [vmem:[%s1] sm:$0xff]
  %v34 = vld [vmem:[%s1 + $0x8] sm:$0x3]
  %v37 = vcombine.high %v33, %v33
  %v39 = vunpack.c.l.s4 1966171168
  %v40 = vunpack.c.0.s8 %v39
  %v41 = vlaneseq
  %v42 = vshrl.u32 %v41, 7
  %v43 = vsub.s32 %v40, %v42
  %v44 = vrot.slane %v33, %v43
  %v46 = vunpack.c.l.s4 1966171168
  %v47 = vunpack.c.0.s8 %v46
  %v48 = vlaneseq
  %v49 = vshrl.u32 %v48, 7
  %v50 = vsub.s32 %v47, %v49
  %v51 = vrot.slane %v37, %v50
  %v52 = vcombine.high %v44, %v44
  %v53 = vcombine.high %v51, %v51
  %v55 = vunpack.c.l.s4 1966171168
  %v56 = vunpack.c.0.s8 %v55
  %v57 = vlaneseq
  %v58 = vshrl.u32 %v57, 7
  %v59 = vsub.s32 %v56, %v58
  %v60 = vrot.slane %v44, %v59
  %v62 = vunpack.c.l.s4 1966171168
  %v63 = vunpack.c.0.s8 %v62
  %v64 = vlaneseq
  %v65 = vshrl.u32 %v64, 7
  %v66 = vsub.s32 %v63, %v65
  %v67 = vrot.slane %v51, %v66
  %v69 = vunpack.c.l.s4 1966171168
  %v70 = vunpack.c.0.s8 %v69
  %v71 = vlaneseq
  %v72 = vshrl.u32 %v71, 7
  %v73 = vsub.s32 %v70, %v72
  %v74 = vrot.slane %v52, %v73
  %v76 = vunpack.c.l.s4 1966171168
  %v77 = vunpack.c.0.s8 %v76
  %v78 = vlaneseq
  %v79 = vshrl.u32 %v78, 7
  %v80 = vsub.s32 %v77, %v79
  %v81 = vrot.slane %v53, %v80
  %v82 = vcombine.high %v60, %v60
  %v83 = vcombine.high %v67, %v67
  %v84 = vcombine.high %v74, %v74
  %v85 = vcombine.high %v81, %v81
  %v87 = vunpack.c.l.s4 1966171168
  %v88 = vunpack.c.0.s8 %v87
  %v89 = vlaneseq
  %v90 = vshrl.u32 %v89, 7
  %v91 = vsub.s32 %v88, %v90
  %v92 = vrot.slane %v34, %v91
  %v93 = vcombine.high %v92, %v92
  %v95 = vunpack.c.l.s4 1966171168
  %v96 = vunpack.c.0.s8 %v95
  %v97 = vlaneseq
  %v98 = vshrl.u32 %v97, 7
  %v99 = vsub.s32 %v96, %v98
  %v100 = vrot.slane %v92, %v99
  %v102 = vunpack.c.l.s4 1966171168
  %v103 = vunpack.c.0.s8 %v102
  %v104 = vlaneseq
  %v105 = vshrl.u32 %v104, 7
  %v106 = vsub.s32 %v103, %v105
  %v107 = vrot.slane %v93, %v106
  %v108 = vlaneseq
  %v109 = vshrl.u32 %v108, 7
  %v110 = vsub.s32 0, %v109
  %v111 = vrot.slane %v60, %v110
  %v112 = vlaneseq
  %v113 = vshrl.u32 %v112, 7
  %v114 = vsub.s32 0, %v113
  %v115 = vrot.slane %v74, %v114
  %v116 = vlaneseq
  %v117 = vshrl.u32 %v116, 7
  %v118 = vsub.s32 0, %v117
  %v119 = vrot.slane %v82, %v118
  %v120 = vlaneseq
  %v121 = vshrl.u32 %v120, 7
  %v122 = vsub.s32 0, %v121
  %v123 = vrot.slane %v84, %v122
  %v124 = vlaneseq
  %v125 = vshrl.u32 %v124, 7
  %v126 = vsub.s32 0, %v125
  %v127 = vrot.slane %v67, %v126
  %v128 = vlaneseq
  %v129 = vshrl.u32 %v128, 7
  %v130 = vsub.s32 0, %v129
  %v131 = vrot.slane %v81, %v130
  %v132 = vlaneseq
  %v133 = vshrl.u32 %v132, 7
  %v134 = vsub.s32 0, %v133
  %v135 = vrot.slane %v83, %v134
  %v136 = vlaneseq
  %v137 = vshrl.u32 %v136, 7
  %v138 = vsub.s32 0, %v137
  %v139 = vrot.slane %v85, %v138
  %v140 = vlaneseq
  %v141 = vshrl.u32 %v140, 7
  %v142 = vsub.s32 0, %v141
  %v143 = vrot.slane %v100, %v142
  %v144 = vlaneseq
  %v145 = vshrl.u32 %v144, 7
  %v146 = vsub.s32 0, %v145
  %v147 = vrot.slane %v107, %v146
  %148 = vset.pattern.permute.xlu0 0
  %149 = vperm.xlu0 %148, %v111
  %v150 = vpop.permute.xlu0 %149
  %152 = vset.pattern.permute.xlu0 0
  %153 = vperm.xlu0 %152, %v115
  %v154 = vpop.permute.xlu0 %153
  %156 = vset.pattern.permute.xlu0 0
  %157 = vperm.xlu0 %156, %v119
  %v158 = vpop.permute.xlu0 %157
  %160 = vset.pattern.permute.xlu0 0
  %161 = vperm.xlu0 %160, %v123
  %v162 = vpop.permute.xlu0 %161
  %164 = vset.pattern.permute.xlu0 0
  %165 = vperm.xlu0 %164, %v127
  %v166 = vpop.permute.xlu0 %165
  %168 = vset.pattern.permute.xlu0 0
  %169 = vperm.xlu0 %168, %v131
  %v170 = vpop.permute.xlu0 %169
  %172 = vset.pattern.permute.xlu0 0
  %173 = vperm.xlu0 %172, %v135
  %v174 = vpop.permute.xlu0 %173
  %176 = vset.pattern.permute.xlu0 0
  %177 = vperm.xlu0 %176, %v139
  %v178 = vpop.permute.xlu0 %177
  %180 = vset.pattern.permute.xlu0 0
  %181 = vperm.xlu0 %180, %v143
  %v182 = vpop.permute.xlu0 %181
  %184 = vset.pattern.permute.xlu0 0
  %185 = vperm.xlu0 %184, %v147
  %v186 = vpop.permute.xlu0 %185
  %v188 = vmul.f32 %v32, %v150
  %v189 = vmul.f32 %v32, %v154
  %v190 = vmul.f32 %v32, %v158
  %v191 = vmul.f32 %v32, %v162
  %v192 = vmul.f32 %v32, %v166
  %v193 = vmul.f32 %v32, %v170
  %v194 = vmul.f32 %v32, %v174
  %v195 = vmul.f32 %v32, %v178
  %v196 = vmul.f32 %v32, %v182
  %v197 = vmul.f32 %v32, %v186
  %v198 = vadd.f32 %v188, 0.0
  %v199 = vadd.f32 %v189, 0.0
  %v200 = vadd.f32 %v190, 0.0
  %v201 = vadd.f32 %v191, 0.0
  %v202 = vadd.f32 %v192, 0.0
  %v203 = vadd.f32 %v193, 0.0
  %v204 = vadd.f32 %v194, 0.0
  %v205 = vadd.f32 %v195, 0.0
  %v206 = vadd.f32 %v196, 0.0
  %v207 = vadd.f32 %v197, 0.0
  %208 = vset.pattern.permute.xlu0 1
  %209 = vperm.xlu0 %208, %v111
  %v210 = vpop.permute.xlu0 %209
  %212 = vset.pattern.permute.xlu0 1
  %213 = vperm.xlu0 %212, %v115
  %v214 = vpop.permute.xlu0 %213
  %216 = vset.pattern.permute.xlu0 1
  %217 = vperm.xlu0 %216, %v119
  %v218 = vpop.permute.xlu0 %217
  %220 = vset.pattern.permute.xlu0 1
  %221 = vperm.xlu0 %220, %v123
  %v222 = vpop.permute.xlu0 %221
  %224 = vset.pattern.permute.xlu0 1
  %225 = vperm.xlu0 %224, %v127
  %v226 = vpop.permute.xlu0 %225
  %228 = vset.pattern.permute.xlu0 1
  %229 = vperm.xlu0 %228, %v131
  %v230 = vpop.permute.xlu0 %229
  %232 = vset.pattern.permute.xlu0 1
  %233 = vperm.xlu0 %232, %v135
  %v234 = vpop.permute.xlu0 %233
  %236 = vset.pattern.permute.xlu0 1
  %237 = vperm.xlu0 %236, %v139
  %v238 = vpop.permute.xlu0 %237
  %240 = vset.pattern.permute.xlu0 1
  %241 = vperm.xlu0 %240, %v143
  %v242 = vpop.permute.xlu0 %241
  %244 = vset.pattern.permute.xlu0 1
  %245 = vperm.xlu0 %244, %v147
  %v246 = vpop.permute.xlu0 %245
  %v248 = vmul.f32 %v32, %v210
  %v249 = vmul.f32 %v32, %v214
  %v250 = vmul.f32 %v32, %v218
  %v251 = vmul.f32 %v32, %v222
  %v252 = vmul.f32 %v32, %v226
  %v253 = vmul.f32 %v32, %v230
  %v254 = vmul.f32 %v32, %v234
  %v255 = vmul.f32 %v32, %v238
  %v256 = vmul.f32 %v32, %v242
  %v257 = vmul.f32 %v32, %v246
  %268 = vrot.lane.b32.xlu0 %v248, 127
  %v269 = vpop.permute.xlu0 %268
  %270 = vrot.lane.b32.xlu0 %v249, 127
  %v271 = vpop.permute.xlu0 %270
  %272 = vrot.lane.b32.xlu0 %v250, 127
  %v273 = vpop.permute.xlu0 %272
  %274 = vrot.lane.b32.xlu0 %v251, 127
  %v275 = vpop.permute.xlu0 %274
  %276 = vrot.lane.b32.xlu0 %v252, 127
  %v277 = vpop.permute.xlu0 %276
  %278 = vrot.lane.b32.xlu0 %v253, 127
  %v279 = vpop.permute.xlu0 %278
  %280 = vrot.lane.b32.xlu0 %v254, 127
  %v281 = vpop.permute.xlu0 %280
  %282 = vrot.lane.b32.xlu0 %v255, 127
  %v283 = vpop.permute.xlu0 %282
  %284 = vrot.lane.b32.xlu0 %v256, 127
  %v285 = vpop.permute.xlu0 %284
  %286 = vrot.lane.b32.xlu0 %v257, 127
  %v287 = vpop.permute.xlu0 %286
  %v298 = vadd.f32 %v198, %v269
  %v299 = vadd.f32 %v199, %v271
  %v300 = vadd.f32 %v200, %v273
  %v301 = vadd.f32 %v201, %v275
  %v302 = vadd.f32 %v202, %v277
  %v303 = vadd.f32 %v203, %v279
  %v304 = vadd.f32 %v204, %v281
  %v305 = vadd.f32 %v205, %v283
  %v306 = vadd.f32 %v206, %v285
  %v307 = vadd.f32 %v207, %v287
  %308 = vset.pattern.permute.xlu0 2
  %309 = vperm.xlu0 %308, %v111
  %v310 = vpop.permute.xlu0 %309
  %312 = vset.pattern.permute.xlu0 2
  %313 = vperm.xlu0 %312, %v115
  %v314 = vpop.permute.xlu0 %313
  %316 = vset.pattern.permute.xlu0 2
  %317 = vperm.xlu0 %316, %v119
  %v318 = vpop.permute.xlu0 %317
  %320 = vset.pattern.permute.xlu0 2
  %321 = vperm.xlu0 %320, %v123
  %v322 = vpop.permute.xlu0 %321
  %324 = vset.pattern.permute.xlu0 2
  %325 = vperm.xlu0 %324, %v127
  %v326 = vpop.permute.xlu0 %325
  %328 = vset.pattern.permute.xlu0 2
  %329 = vperm.xlu0 %328, %v131
  %v330 = vpop.permute.xlu0 %329
  %332 = vset.pattern.permute.xlu0 2
  %333 = vperm.xlu0 %332, %v135
  %v334 = vpop.permute.xlu0 %333
  %336 = vset.pattern.permute.xlu0 2
  %337 = vperm.xlu0 %336, %v139
  %v338 = vpop.permute.xlu0 %337
  %340 = vset.pattern.permute.xlu0 2
  %341 = vperm.xlu0 %340, %v143
  %v342 = vpop.permute.xlu0 %341
  %344 = vset.pattern.permute.xlu0 2
  %345 = vperm.xlu0 %344, %v147
  %v346 = vpop.permute.xlu0 %345
  %v348 = vmul.f32 %v32, %v310
  %v349 = vmul.f32 %v32, %v314
  %v350 = vmul.f32 %v32, %v318
  %v351 = vmul.f32 %v32, %v322
  %v352 = vmul.f32 %v32, %v326
  %v353 = vmul.f32 %v32, %v330
  %v354 = vmul.f32 %v32, %v334
  %v355 = vmul.f32 %v32, %v338
  %v356 = vmul.f32 %v32, %v342
  %v357 = vmul.f32 %v32, %v346
  %368 = vrot.lane.b32.xlu0 %v348, 126
  %v369 = vpop.permute.xlu0 %368
  %370 = vrot.lane.b32.xlu0 %v349, 126
  %v371 = vpop.permute.xlu0 %370
  %372 = vrot.lane.b32.xlu0 %v350, 126
  %v373 = vpop.permute.xlu0 %372
  %374 = vrot.lane.b32.xlu0 %v351, 126
  %v375 = vpop.permute.xlu0 %374
  %376 = vrot.lane.b32.xlu0 %v352, 126
  %v377 = vpop.permute.xlu0 %376
  %378 = vrot.lane.b32.xlu0 %v353, 126
  %v379 = vpop.permute.xlu0 %378
  %380 = vrot.lane.b32.xlu0 %v354, 126
  %v381 = vpop.permute.xlu0 %380
  %382 = vrot.lane.b32.xlu0 %v355, 126
  %v383 = vpop.permute.xlu0 %382
  %384 = vrot.lane.b32.xlu0 %v356, 126
  %v385 = vpop.permute.xlu0 %384
  %386 = vrot.lane.b32.xlu0 %v357, 126
  %v387 = vpop.permute.xlu0 %386
  %v398 = vadd.f32 %v298, %v369
  %v399 = vadd.f32 %v299, %v371
  %v400 = vadd.f32 %v300, %v373
  %v401 = vadd.f32 %v301, %v375
  %v402 = vadd.f32 %v302, %v377
  %v403 = vadd.f32 %v303, %v379
  %v404 = vadd.f32 %v304, %v381
  %v405 = vadd.f32 %v305, %v383
  %v406 = vadd.f32 %v306, %v385
  %v407 = vadd.f32 %v307, %v387
  %408 = vset.pattern.permute.xlu0 3
  %409 = vperm.xlu0 %408, %v111
  %v410 = vpop.permute.xlu0 %409
  %412 = vset.pattern.permute.xlu0 3
  %413 = vperm.xlu0 %412, %v115
  %v414 = vpop.permute.xlu0 %413
  %416 = vset.pattern.permute.xlu0 3
  %417 = vperm.xlu0 %416, %v119
  %v418 = vpop.permute.xlu0 %417
  %420 = vset.pattern.permute.xlu0 3
  %421 = vperm.xlu0 %420, %v123
  %v422 = vpop.permute.xlu0 %421
  %424 = vset.pattern.permute.xlu0 3
  %425 = vperm.xlu0 %424, %v127
  %v426 = vpop.permute.xlu0 %425
  %428 = vset.pattern.permute.xlu0 3
  %429 = vperm.xlu0 %428, %v131
  %v430 = vpop.permute.xlu0 %429
  %432 = vset.pattern.permute.xlu0 3
  %433 = vperm.xlu0 %432, %v135
  %v434 = vpop.permute.xlu0 %433
  %436 = vset.pattern.permute.xlu0 3
  %437 = vperm.xlu0 %436, %v139
  %v438 = vpop.permute.xlu0 %437
  %440 = vset.pattern.permute.xlu0 3
  %441 = vperm.xlu0 %440, %v143
  %v442 = vpop.permute.xlu0 %441
  %444 = vset.pattern.permute.xlu0 3
  %445 = vperm.xlu0 %444, %v147
  %v446 = vpop.permute.xlu0 %445
  %v448 = vmul.f32 %v32, %v410
  %v449 = vmul.f32 %v32, %v414
  %v450 = vmul.f32 %v32, %v418
  %v451 = vmul.f32 %v32, %v422
  %v452 = vmul.f32 %v32, %v426
  %v453 = vmul.f32 %v32, %v430
  %v454 = vmul.f32 %v32, %v434
  %v455 = vmul.f32 %v32, %v438
  %v456 = vmul.f32 %v32, %v442
  %v457 = vmul.f32 %v32, %v446
  %468 = vrot.lane.b32.xlu0 %v448, 125
  %v469 = vpop.permute.xlu0 %468
  %470 = vrot.lane.b32.xlu0 %v449, 125
  %v471 = vpop.permute.xlu0 %470
  %472 = vrot.lane.b32.xlu0 %v450, 125
  %v473 = vpop.permute.xlu0 %472
  %474 = vrot.lane.b32.xlu0 %v451, 125
  %v475 = vpop.permute.xlu0 %474
  %476 = vrot.lane.b32.xlu0 %v452, 125
  %v477 = vpop.permute.xlu0 %476
  %478 = vrot.lane.b32.xlu0 %v453, 125
  %v479 = vpop.permute.xlu0 %478
  %480 = vrot.lane.b32.xlu0 %v454, 125
  %v481 = vpop.permute.xlu0 %480
  %482 = vrot.lane.b32.xlu0 %v455, 125
  %v483 = vpop.permute.xlu0 %482
  %484 = vrot.lane.b32.xlu0 %v456, 125
  %v485 = vpop.permute.xlu0 %484
  %486 = vrot.lane.b32.xlu0 %v457, 125
  %v487 = vpop.permute.xlu0 %486
  %v498 = vadd.f32 %v398, %v469
  %v499 = vadd.f32 %v399, %v471
  %v500 = vadd.f32 %v400, %v473
  %v501 = vadd.f32 %v401, %v475
  %v502 = vadd.f32 %v402, %v477
  %v503 = vadd.f32 %v403, %v479
  %v504 = vadd.f32 %v404, %v481
  %v505 = vadd.f32 %v405, %v483
  %v506 = vadd.f32 %v406, %v485
  %v507 = vadd.f32 %v407, %v487
  %508 = vset.pattern.permute.xlu0 4
  %509 = vperm.xlu0 %508, %v111
  %v510 = vpop.permute.xlu0 %509
  %512 = vset.pattern.permute.xlu0 4
  %513 = vperm.xlu0 %512, %v115
  %v514 = vpop.permute.xlu0 %513
  %516 = vset.pattern.permute.xlu0 4
  %517 = vperm.xlu0 %516, %v119
  %v518 = vpop.permute.xlu0 %517
  %520 = vset.pattern.permute.xlu0 4
  %521 = vperm.xlu0 %520, %v123
  %v522 = vpop.permute.xlu0 %521
  %524 = vset.pattern.permute.xlu0 4
  %525 = vperm.xlu0 %524, %v127
  %v526 = vpop.permute.xlu0 %525
  %528 = vset.pattern.permute.xlu0 4
  %529 = vperm.xlu0 %528, %v131
  %v530 = vpop.permute.xlu0 %529
  %532 = vset.pattern.permute.xlu0 4
  %533 = vperm.xlu0 %532, %v135
  %v534 = vpop.permute.xlu0 %533
  %536 = vset.pattern.permute.xlu0 4
  %537 = vperm.xlu0 %536, %v139
  %v538 = vpop.permute.xlu0 %537
  %540 = vset.pattern.permute.xlu0 4
  %541 = vperm.xlu0 %540, %v143
  %v542 = vpop.permute.xlu0 %541
  %544 = vset.pattern.permute.xlu0 4
  %545 = vperm.xlu0 %544, %v147
  %v546 = vpop.permute.xlu0 %545
  %v548 = vmul.f32 %v32, %v510
  %v549 = vmul.f32 %v32, %v514
  %v550 = vmul.f32 %v32, %v518
  %v551 = vmul.f32 %v32, %v522
  %v552 = vmul.f32 %v32, %v526
  %v553 = vmul.f32 %v32, %v530
  %v554 = vmul.f32 %v32, %v534
  %v555 = vmul.f32 %v32, %v538
  %v556 = vmul.f32 %v32, %v542
  %v557 = vmul.f32 %v32, %v546
  %568 = vrot.lane.b32.xlu0 %v548, 124
  %v569 = vpop.permute.xlu0 %568
  %570 = vrot.lane.b32.xlu0 %v549, 124
  %v571 = vpop.permute.xlu0 %570
  %572 = vrot.lane.b32.xlu0 %v550, 124
  %v573 = vpop.permute.xlu0 %572
  %574 = vrot.lane.b32.xlu0 %v551, 124
  %v575 = vpop.permute.xlu0 %574
  %576 = vrot.lane.b32.xlu0 %v552, 124
  %v577 = vpop.permute.xlu0 %576
  %578 = vrot.lane.b32.xlu0 %v553, 124
  %v579 = vpop.permute.xlu0 %578
  %580 = vrot.lane.b32.xlu0 %v554, 124
  %v581 = vpop.permute.xlu0 %580
  %582 = vrot.lane.b32.xlu0 %v555, 124
  %v583 = vpop.permute.xlu0 %582
  %584 = vrot.lane.b32.xlu0 %v556, 124
  %v585 = vpop.permute.xlu0 %584
  %586 = vrot.lane.b32.xlu0 %v557, 124
  %v587 = vpop.permute.xlu0 %586
  %v598 = vadd.f32 %v498, %v569
  %v599 = vadd.f32 %v499, %v571
  %v600 = vadd.f32 %v500, %v573
  %v601 = vadd.f32 %v501, %v575
  %v602 = vadd.f32 %v502, %v577
  %v603 = vadd.f32 %v503, %v579
  %v604 = vadd.f32 %v504, %v581
  %v605 = vadd.f32 %v505, %v583
  %v606 = vadd.f32 %v506, %v585
  %v607 = vadd.f32 %v507, %v587
  %608 = vset.pattern.permute.xlu0 5
  %609 = vperm.xlu0 %608, %v111
  %v610 = vpop.permute.xlu0 %609
  %612 = vset.pattern.permute.xlu0 5
  %613 = vperm.xlu0 %612, %v115
  %v614 = vpop.permute.xlu0 %613
  %616 = vset.pattern.permute.xlu0 5
  %617 = vperm.xlu0 %616, %v119
  %v618 = vpop.permute.xlu0 %617
  %620 = vset.pattern.permute.xlu0 5
  %621 = vperm.xlu0 %620, %v123
  %v622 = vpop.permute.xlu0 %621
  %624 = vset.pattern.permute.xlu0 5
  %625 = vperm.xlu0 %624, %v127
  %v626 = vpop.permute.xlu0 %625
  %628 = vset.pattern.permute.xlu0 5
  %629 = vperm.xlu0 %628, %v131
  %v630 = vpop.permute.xlu0 %629
  %632 = vset.pattern.permute.xlu0 5
  %633 = vperm.xlu0 %632, %v135
  %v634 = vpop.permute.xlu0 %633
  %636 = vset.pattern.permute.xlu0 5
  %637 = vperm.xlu0 %636, %v139
  %v638 = vpop.permute.xlu0 %637
  %640 = vset.pattern.permute.xlu0 5
  %641 = vperm.xlu0 %640, %v143
  %v642 = vpop.permute.xlu0 %641
  %644 = vset.pattern.permute.xlu0 5
  %645 = vperm.xlu0 %644, %v147
  %v646 = vpop.permute.xlu0 %645
  %v648 = vmul.f32 %v32, %v610
  %v649 = vmul.f32 %v32, %v614
  %v650 = vmul.f32 %v32, %v618
  %v651 = vmul.f32 %v32, %v622
  %v652 = vmul.f32 %v32, %v626
  %v653 = vmul.f32 %v32, %v630
  %v654 = vmul.f32 %v32, %v634
  %v655 = vmul.f32 %v32, %v638
  %v656 = vmul.f32 %v32, %v642
  %v657 = vmul.f32 %v32, %v646
  %668 = vrot.lane.b32.xlu0 %v648, 123
  %v669 = vpop.permute.xlu0 %668
  %670 = vrot.lane.b32.xlu0 %v649, 123
  %v671 = vpop.permute.xlu0 %670
  %672 = vrot.lane.b32.xlu0 %v650, 123
  %v673 = vpop.permute.xlu0 %672
  %674 = vrot.lane.b32.xlu0 %v651, 123
  %v675 = vpop.permute.xlu0 %674
  %676 = vrot.lane.b32.xlu0 %v652, 123
  %v677 = vpop.permute.xlu0 %676
  %678 = vrot.lane.b32.xlu0 %v653, 123
  %v679 = vpop.permute.xlu0 %678
  %680 = vrot.lane.b32.xlu0 %v654, 123
  %v681 = vpop.permute.xlu0 %680
  %682 = vrot.lane.b32.xlu0 %v655, 123
  %v683 = vpop.permute.xlu0 %682
  %684 = vrot.lane.b32.xlu0 %v656, 123
  %v685 = vpop.permute.xlu0 %684
  %686 = vrot.lane.b32.xlu0 %v657, 123
  %v687 = vpop.permute.xlu0 %686
  %v698 = vadd.f32 %v598, %v669
  %v699 = vadd.f32 %v599, %v671
  %v700 = vadd.f32 %v600, %v673
  %v701 = vadd.f32 %v601, %v675
  %v702 = vadd.f32 %v602, %v677
  %v703 = vadd.f32 %v603, %v679
  %v704 = vadd.f32 %v604, %v681
  %v705 = vadd.f32 %v605, %v683
  %v706 = vadd.f32 %v606, %v685
  %v707 = vadd.f32 %v607, %v687
  %708 = vset.pattern.permute.xlu0 6
  %709 = vperm.xlu0 %708, %v111
  %v710 = vpop.permute.xlu0 %709
  %712 = vset.pattern.permute.xlu0 6
  %713 = vperm.xlu0 %712, %v115
  %v714 = vpop.permute.xlu0 %713
  %716 = vset.pattern.permute.xlu0 6
  %717 = vperm.xlu0 %716, %v119
  %v718 = vpop.permute.xlu0 %717
  %720 = vset.pattern.permute.xlu0 6
  %721 = vperm.xlu0 %720, %v123
  %v722 = vpop.permute.xlu0 %721
  %724 = vset.pattern.permute.xlu0 6
  %725 = vperm.xlu0 %724, %v127
  %v726 = vpop.permute.xlu0 %725
  %728 = vset.pattern.permute.xlu0 6
  %729 = vperm.xlu0 %728, %v131
  %v730 = vpop.permute.xlu0 %729
  %732 = vset.pattern.permute.xlu0 6
  %733 = vperm.xlu0 %732, %v135
  %v734 = vpop.permute.xlu0 %733
  %736 = vset.pattern.permute.xlu0 6
  %737 = vperm.xlu0 %736, %v139
  %v738 = vpop.permute.xlu0 %737
  %740 = vset.pattern.permute.xlu0 6
  %741 = vperm.xlu0 %740, %v143
  %v742 = vpop.permute.xlu0 %741
  %744 = vset.pattern.permute.xlu0 6
  %745 = vperm.xlu0 %744, %v147
  %v746 = vpop.permute.xlu0 %745
  %v748 = vmul.f32 %v32, %v710
  %v749 = vmul.f32 %v32, %v714
  %v750 = vmul.f32 %v32, %v718
  %v751 = vmul.f32 %v32, %v722
  %v752 = vmul.f32 %v32, %v726
  %v753 = vmul.f32 %v32, %v730
  %v754 = vmul.f32 %v32, %v734
  %v755 = vmul.f32 %v32, %v738
  %v756 = vmul.f32 %v32, %v742
  %v757 = vmul.f32 %v32, %v746
  %768 = vrot.lane.b32.xlu0 %v748, 122
  %v769 = vpop.permute.xlu0 %768
  %770 = vrot.lane.b32.xlu0 %v749, 122
  %v771 = vpop.permute.xlu0 %770
  %772 = vrot.lane.b32.xlu0 %v750, 122
  %v773 = vpop.permute.xlu0 %772
  %774 = vrot.lane.b32.xlu0 %v751, 122
  %v775 = vpop.permute.xlu0 %774
  %776 = vrot.lane.b32.xlu0 %v752, 122
  %v777 = vpop.permute.xlu0 %776
  %778 = vrot.lane.b32.xlu0 %v753, 122
  %v779 = vpop.permute.xlu0 %778
  %780 = vrot.lane.b32.xlu0 %v754, 122
  %v781 = vpop.permute.xlu0 %780
  %782 = vrot.lane.b32.xlu0 %v755, 122
  %v783 = vpop.permute.xlu0 %782
  %784 = vrot.lane.b32.xlu0 %v756, 122
  %v785 = vpop.permute.xlu0 %784
  %786 = vrot.lane.b32.xlu0 %v757, 122
  %v787 = vpop.permute.xlu0 %786
  %v798 = vadd.f32 %v698, %v769
  %v799 = vadd.f32 %v699, %v771
  %v800 = vadd.f32 %v700, %v773
  %v801 = vadd.f32 %v701, %v775
  %v802 = vadd.f32 %v702, %v777
  %v803 = vadd.f32 %v703, %v779
  %v804 = vadd.f32 %v704, %v781
  %v805 = vadd.f32 %v705, %v783
  %v806 = vadd.f32 %v706, %v785
  %v807 = vadd.f32 %v707, %v787
  %808 = vset.pattern.permute.xlu0 7
  %809 = vperm.xlu0 %808, %v111
  %v810 = vpop.permute.xlu0 %809
  %812 = vset.pattern.permute.xlu0 7
  %813 = vperm.xlu0 %812, %v115
  %v814 = vpop.permute.xlu0 %813
  %816 = vset.pattern.permute.xlu0 7
  %817 = vperm.xlu0 %816, %v119
  %v818 = vpop.permute.xlu0 %817
  %820 = vset.pattern.permute.xlu0 7
  %821 = vperm.xlu0 %820, %v123
  %v822 = vpop.permute.xlu0 %821
  %824 = vset.pattern.permute.xlu0 7
  %825 = vperm.xlu0 %824, %v127
  %v826 = vpop.permute.xlu0 %825
  %828 = vset.pattern.permute.xlu0 7
  %829 = vperm.xlu0 %828, %v131
  %v830 = vpop.permute.xlu0 %829
  %832 = vset.pattern.permute.xlu0 7
  %833 = vperm.xlu0 %832, %v135
  %v834 = vpop.permute.xlu0 %833
  %836 = vset.pattern.permute.xlu0 7
  %837 = vperm.xlu0 %836, %v139
  %v838 = vpop.permute.xlu0 %837
  %840 = vset.pattern.permute.xlu0 7
  %841 = vperm.xlu0 %840, %v143
  %v842 = vpop.permute.xlu0 %841
  %844 = vset.pattern.permute.xlu0 7
  %845 = vperm.xlu0 %844, %v147
  %v846 = vpop.permute.xlu0 %845
  %v848 = vmul.f32 %v32, %v810
  %v849 = vmul.f32 %v32, %v814
  %v850 = vmul.f32 %v32, %v818
  %v851 = vmul.f32 %v32, %v822
  %v852 = vmul.f32 %v32, %v826
  %v853 = vmul.f32 %v32, %v830
  %v854 = vmul.f32 %v32, %v834
  %v855 = vmul.f32 %v32, %v838
  %v856 = vmul.f32 %v32, %v842
  %v857 = vmul.f32 %v32, %v846
  %868 = vrot.lane.b32.xlu0 %v848, 121
  %v869 = vpop.permute.xlu0 %868
  %870 = vrot.lane.b32.xlu0 %v849, 121
  %v871 = vpop.permute.xlu0 %870
  %872 = vrot.lane.b32.xlu0 %v850, 121
  %v873 = vpop.permute.xlu0 %872
  %874 = vrot.lane.b32.xlu0 %v851, 121
  %v875 = vpop.permute.xlu0 %874
  %876 = vrot.lane.b32.xlu0 %v852, 121
  %v877 = vpop.permute.xlu0 %876
  %878 = vrot.lane.b32.xlu0 %v853, 121
  %v879 = vpop.permute.xlu0 %878
  %880 = vrot.lane.b32.xlu0 %v854, 121
  %v881 = vpop.permute.xlu0 %880
  %882 = vrot.lane.b32.xlu0 %v855, 121
  %v883 = vpop.permute.xlu0 %882
  %884 = vrot.lane.b32.xlu0 %v856, 121
  %v885 = vpop.permute.xlu0 %884
  %886 = vrot.lane.b32.xlu0 %v857, 121
  %v887 = vpop.permute.xlu0 %886
  %v898 = vadd.f32 %v798, %v869
  %v899 = vadd.f32 %v799, %v871
  %v900 = vadd.f32 %v800, %v873
  %v901 = vadd.f32 %v801, %v875
  %v902 = vadd.f32 %v802, %v877
  %v903 = vadd.f32 %v803, %v879
  %v904 = vadd.f32 %v804, %v881
  %v905 = vadd.f32 %v805, %v883
  %v906 = vadd.f32 %v806, %v885
  %v907 = vadd.f32 %v807, %v887
  %908 = vset.pattern.permute.xlu0 8
  %909 = vperm.xlu0 %908, %v111
  %v910 = vpop.permute.xlu0 %909
  %912 = vset.pattern.permute.xlu0 8
  %913 = vperm.xlu0 %912, %v115
  %v914 = vpop.permute.xlu0 %913
  %916 = vset.pattern.permute.xlu0 8
  %917 = vperm.xlu0 %916, %v119
  %v918 = vpop.permute.xlu0 %917
  %920 = vset.pattern.permute.xlu0 8
  %921 = vperm.xlu0 %920, %v123
  %v922 = vpop.permute.xlu0 %921
  %924 = vset.pattern.permute.xlu0 8
  %925 = vperm.xlu0 %924, %v127
  %v926 = vpop.permute.xlu0 %925
  %928 = vset.pattern.permute.xlu0 8
  %929 = vperm.xlu0 %928, %v131
  %v930 = vpop.permute.xlu0 %929
  %932 = vset.pattern.permute.xlu0 8
  %933 = vperm.xlu0 %932, %v135
  %v934 = vpop.permute.xlu0 %933
  %936 = vset.pattern.permute.xlu0 8
  %937 = vperm.xlu0 %936, %v139
  %v938 = vpop.permute.xlu0 %937
  %940 = vset.pattern.permute.xlu0 8
  %941 = vperm.xlu0 %940, %v143
  %v942 = vpop.permute.xlu0 %941
  %944 = vset.pattern.permute.xlu0 8
  %945 = vperm.xlu0 %944, %v147
  %v946 = vpop.permute.xlu0 %945
  %v948 = vmul.f32 %v32, %v910
  %v949 = vmul.f32 %v32, %v914
  %v950 = vmul.f32 %v32, %v918
  %v951 = vmul.f32 %v32, %v922
  %v952 = vmul.f32 %v32, %v926
  %v953 = vmul.f32 %v32, %v930
  %v954 = vmul.f32 %v32, %v934
  %v955 = vmul.f32 %v32, %v938
  %v956 = vmul.f32 %v32, %v942
  %v957 = vmul.f32 %v32, %v946
  %968 = vrot.lane.b32.xlu0 %v948, 120
  %v969 = vpop.permute.xlu0 %968
  %970 = vrot.lane.b32.xlu0 %v949, 120
  %v971 = vpop.permute.xlu0 %970
  %972 = vrot.lane.b32.xlu0 %v950, 120
  %v973 = vpop.permute.xlu0 %972
  %974 = vrot.lane.b32.xlu0 %v951, 120
  %v975 = vpop.permute.xlu0 %974
  %976 = vrot.lane.b32.xlu0 %v952, 120
  %v977 = vpop.permute.xlu0 %976
  %978 = vrot.lane.b32.xlu0 %v953, 120
  %v979 = vpop.permute.xlu0 %978
  %980 = vrot.lane.b32.xlu0 %v954, 120
  %v981 = vpop.permute.xlu0 %980
  %982 = vrot.lane.b32.xlu0 %v955, 120
  %v983 = vpop.permute.xlu0 %982
  %984 = vrot.lane.b32.xlu0 %v956, 120
  %v985 = vpop.permute.xlu0 %984
  %986 = vrot.lane.b32.xlu0 %v957, 120
  %v987 = vpop.permute.xlu0 %986
  %v998 = vadd.f32 %v898, %v969
  %v999 = vadd.f32 %v899, %v971
  %v1000 = vadd.f32 %v900, %v973
  %v1001 = vadd.f32 %v901, %v975
  %v1002 = vadd.f32 %v902, %v977
  %v1003 = vadd.f32 %v903, %v979
  %v1004 = vadd.f32 %v904, %v981
  %v1005 = vadd.f32 %v905, %v983
  %v1006 = vadd.f32 %v906, %v985
  %v1007 = vadd.f32 %v907, %v987
  %1008 = vset.pattern.permute.xlu0 9
  %1009 = vperm.xlu0 %1008, %v111
  %v1010 = vpop.permute.xlu0 %1009
  %1012 = vset.pattern.permute.xlu0 9
  %1013 = vperm.xlu0 %1012, %v115
  %v1014 = vpop.permute.xlu0 %1013
  %1016 = vset.pattern.permute.xlu0 9
  %1017 = vperm.xlu0 %1016, %v119
  %v1018 = vpop.permute.xlu0 %1017
  %1020 = vset.pattern.permute.xlu0 9
  %1021 = vperm.xlu0 %1020, %v123
  %v1022 = vpop.permute.xlu0 %1021
  %1024 = vset.pattern.permute.xlu0 9
  %1025 = vperm.xlu0 %1024, %v127
  %v1026 = vpop.permute.xlu0 %1025
  %1028 = vset.pattern.permute.xlu0 9
  %1029 = vperm.xlu0 %1028, %v131
  %v1030 = vpop.permute.xlu0 %1029
  %1032 = vset.pattern.permute.xlu0 9
  %1033 = vperm.xlu0 %1032, %v135
  %v1034 = vpop.permute.xlu0 %1033
  %1036 = vset.pattern.permute.xlu0 9
  %1037 = vperm.xlu0 %1036, %v139
  %v1038 = vpop.permute.xlu0 %1037
  %1040 = vset.pattern.permute.xlu0 9
  %1041 = vperm.xlu0 %1040, %v143
  %v1042 = vpop.permute.xlu0 %1041
  %1044 = vset.pattern.permute.xlu0 9
  %1045 = vperm.xlu0 %1044, %v147
  %v1046 = vpop.permute.xlu0 %1045
  %v1048 = vmul.f32 %v32, %v1010
  %v1049 = vmul.f32 %v32, %v1014
  %v1050 = vmul.f32 %v32, %v1018
  %v1051 = vmul.f32 %v32, %v1022
  %v1052 = vmul.f32 %v32, %v1026
  %v1053 = vmul.f32 %v32, %v1030
  %v1054 = vmul.f32 %v32, %v1034
  %v1055 = vmul.f32 %v32, %v1038
  %v1056 = vmul.f32 %v32, %v1042
  %v1057 = vmul.f32 %v32, %v1046
  %1068 = vrot.lane.b32.xlu0 %v1048, 119
  %v1069 = vpop.permute.xlu0 %1068
  %1070 = vrot.lane.b32.xlu0 %v1049, 119
  %v1071 = vpop.permute.xlu0 %1070
  %1072 = vrot.lane.b32.xlu0 %v1050, 119
  %v1073 = vpop.permute.xlu0 %1072
  %1074 = vrot.lane.b32.xlu0 %v1051, 119
  %v1075 = vpop.permute.xlu0 %1074
  %1076 = vrot.lane.b32.xlu0 %v1052, 119
  %v1077 = vpop.permute.xlu0 %1076
  %1078 = vrot.lane.b32.xlu0 %v1053, 119
  %v1079 = vpop.permute.xlu0 %1078
  %1080 = vrot.lane.b32.xlu0 %v1054, 119
  %v1081 = vpop.permute.xlu0 %1080
  %1082 = vrot.lane.b32.xlu0 %v1055, 119
  %v1083 = vpop.permute.xlu0 %1082
  %1084 = vrot.lane.b32.xlu0 %v1056, 119
  %v1085 = vpop.permute.xlu0 %1084
  %1086 = vrot.lane.b32.xlu0 %v1057, 119
  %v1087 = vpop.permute.xlu0 %1086
  %v1098 = vadd.f32 %v998, %v1069
  %v1099 = vadd.f32 %v999, %v1071
  %v1100 = vadd.f32 %v1000, %v1073
  %v1101 = vadd.f32 %v1001, %v1075
  %v1102 = vadd.f32 %v1002, %v1077
  %v1103 = vadd.f32 %v1003, %v1079
  %v1104 = vadd.f32 %v1004, %v1081
  %v1105 = vadd.f32 %v1005, %v1083
  %v1106 = vadd.f32 %v1006, %v1085
  %v1107 = vadd.f32 %v1007, %v1087
  %1108 = vset.pattern.permute.xlu0 10
  %1109 = vperm.xlu0 %1108, %v111
  %v1110 = vpop.permute.xlu0 %1109
  %1112 = vset.pattern.permute.xlu0 10
  %1113 = vperm.xlu0 %1112, %v115
  %v1114 = vpop.permute.xlu0 %1113
  %1116 = vset.pattern.permute.xlu0 10
  %1117 = vperm.xlu0 %1116, %v119
  %v1118 = vpop.permute.xlu0 %1117
  %1120 = vset.pattern.permute.xlu0 10
  %1121 = vperm.xlu0 %1120, %v123
  %v1122 = vpop.permute.xlu0 %1121
  %1124 = vset.pattern.permute.xlu0 10
  %1125 = vperm.xlu0 %1124, %v127
  %v1126 = vpop.permute.xlu0 %1125
  %1128 = vset.pattern.permute.xlu0 10
  %1129 = vperm.xlu0 %1128, %v131
  %v1130 = vpop.permute.xlu0 %1129
  %1132 = vset.pattern.permute.xlu0 10
  %1133 = vperm.xlu0 %1132, %v135
  %v1134 = vpop.permute.xlu0 %1133
  %1136 = vset.pattern.permute.xlu0 10
  %1137 = vperm.xlu0 %1136, %v139
  %v1138 = vpop.permute.xlu0 %1137
  %1140 = vset.pattern.permute.xlu0 10
  %1141 = vperm.xlu0 %1140, %v143
  %v1142 = vpop.permute.xlu0 %1141
  %1144 = vset.pattern.permute.xlu0 10
  %1145 = vperm.xlu0 %1144, %v147
  %v1146 = vpop.permute.xlu0 %1145
  %v1148 = vmul.f32 %v32, %v1110
  %v1149 = vmul.f32 %v32, %v1114
  %v1150 = vmul.f32 %v32, %v1118
  %v1151 = vmul.f32 %v32, %v1122
  %v1152 = vmul.f32 %v32, %v1126
  %v1153 = vmul.f32 %v32, %v1130
  %v1154 = vmul.f32 %v32, %v1134
  %v1155 = vmul.f32 %v32, %v1138
  %v1156 = vmul.f32 %v32, %v1142
  %v1157 = vmul.f32 %v32, %v1146
  %1168 = vrot.lane.b32.xlu0 %v1148, 118
  %v1169 = vpop.permute.xlu0 %1168
  %1170 = vrot.lane.b32.xlu0 %v1149, 118
  %v1171 = vpop.permute.xlu0 %1170
  %1172 = vrot.lane.b32.xlu0 %v1150, 118
  %v1173 = vpop.permute.xlu0 %1172
  %1174 = vrot.lane.b32.xlu0 %v1151, 118
  %v1175 = vpop.permute.xlu0 %1174
  %1176 = vrot.lane.b32.xlu0 %v1152, 118
  %v1177 = vpop.permute.xlu0 %1176
  %1178 = vrot.lane.b32.xlu0 %v1153, 118
  %v1179 = vpop.permute.xlu0 %1178
  %1180 = vrot.lane.b32.xlu0 %v1154, 118
  %v1181 = vpop.permute.xlu0 %1180
  %1182 = vrot.lane.b32.xlu0 %v1155, 118
  %v1183 = vpop.permute.xlu0 %1182
  %1184 = vrot.lane.b32.xlu0 %v1156, 118
  %v1185 = vpop.permute.xlu0 %1184
  %1186 = vrot.lane.b32.xlu0 %v1157, 118
  %v1187 = vpop.permute.xlu0 %1186
  %v1198 = vadd.f32 %v1098, %v1169
  %v1199 = vadd.f32 %v1099, %v1171
  %v1200 = vadd.f32 %v1100, %v1173
  %v1201 = vadd.f32 %v1101, %v1175
  %v1202 = vadd.f32 %v1102, %v1177
  %v1203 = vadd.f32 %v1103, %v1179
  %v1204 = vadd.f32 %v1104, %v1181
  %v1205 = vadd.f32 %v1105, %v1183
  %v1206 = vadd.f32 %v1106, %v1185
  %v1207 = vadd.f32 %v1107, %v1187
  %v1208 = vld [vmem:[%s2] sm:$0xff]
  %v1209 = vld [vmem:[%s2 + $0x8] sm:$0x3]
  %v1212 = vcombine.high %v1208, %v1208
  %v1214 = vunpack.c.l.s4 1966171168
  %v1215 = vunpack.c.0.s8 %v1214
  %v1216 = vlaneseq
  %v1217 = vshrl.u32 %v1216, 7
  %v1218 = vsub.s32 %v1215, %v1217
  %v1219 = vrot.slane %v1208, %v1218
  %v1221 = vunpack.c.l.s4 1966171168
  %v1222 = vunpack.c.0.s8 %v1221
  %v1223 = vlaneseq
  %v1224 = vshrl.u32 %v1223, 7
  %v1225 = vsub.s32 %v1222, %v1224
  %v1226 = vrot.slane %v1212, %v1225
  %v1227 = vcombine.high %v1219, %v1219
  %v1228 = vcombine.high %v1226, %v1226
  %v1230 = vunpack.c.l.s4 1966171168
  %v1231 = vunpack.c.0.s8 %v1230
  %v1232 = vlaneseq
  %v1233 = vshrl.u32 %v1232, 7
  %v1234 = vsub.s32 %v1231, %v1233
  %v1235 = vrot.slane %v1219, %v1234
  %v1237 = vunpack.c.l.s4 1966171168
  %v1238 = vunpack.c.0.s8 %v1237
  %v1239 = vlaneseq
  %v1240 = vshrl.u32 %v1239, 7
  %v1241 = vsub.s32 %v1238, %v1240
  %v1242 = vrot.slane %v1226, %v1241
  %v1244 = vunpack.c.l.s4 1966171168
  %v1245 = vunpack.c.0.s8 %v1244
  %v1246 = vlaneseq
  %v1247 = vshrl.u32 %v1246, 7
  %v1248 = vsub.s32 %v1245, %v1247
  %v1249 = vrot.slane %v1227, %v1248
  %v1251 = vunpack.c.l.s4 1966171168
  %v1252 = vunpack.c.0.s8 %v1251
  %v1253 = vlaneseq
  %v1254 = vshrl.u32 %v1253, 7
  %v1255 = vsub.s32 %v1252, %v1254
  %v1256 = vrot.slane %v1228, %v1255
  %v1257 = vcombine.high %v1235, %v1235
  %v1258 = vcombine.high %v1242, %v1242
  %v1259 = vcombine.high %v1249, %v1249
  %v1260 = vcombine.high %v1256, %v1256
  %v1262 = vunpack.c.l.s4 1966171168
  %v1263 = vunpack.c.0.s8 %v1262
  %v1264 = vlaneseq
  %v1265 = vshrl.u32 %v1264, 7
  %v1266 = vsub.s32 %v1263, %v1265
  %v1267 = vrot.slane %v1209, %v1266
  %v1268 = vcombine.high %v1267, %v1267
  %v1270 = vunpack.c.l.s4 1966171168
  %v1271 = vunpack.c.0.s8 %v1270
  %v1272 = vlaneseq
  %v1273 = vshrl.u32 %v1272, 7
  %v1274 = vsub.s32 %v1271, %v1273
  %v1275 = vrot.slane %v1267, %v1274
  %v1277 = vunpack.c.l.s4 1966171168
  %v1278 = vunpack.c.0.s8 %v1277
  %v1279 = vlaneseq
  %v1280 = vshrl.u32 %v1279, 7
  %v1281 = vsub.s32 %v1278, %v1280
  %v1282 = vrot.slane %v1268, %v1281
  %v1283 = vlaneseq
  %v1284 = vshrl.u32 %v1283, 7
  %v1285 = vsub.s32 0, %v1284
  %v1286 = vrot.slane %v1235, %v1285
  %v1287 = vlaneseq
  %v1288 = vshrl.u32 %v1287, 7
  %v1289 = vsub.s32 0, %v1288
  %v1290 = vrot.slane %v1249, %v1289
  %v1291 = vlaneseq
  %v1292 = vshrl.u32 %v1291, 7
  %v1293 = vsub.s32 0, %v1292
  %v1294 = vrot.slane %v1257, %v1293
  %v1295 = vlaneseq
  %v1296 = vshrl.u32 %v1295, 7
  %v1297 = vsub.s32 0, %v1296
  %v1298 = vrot.slane %v1259, %v1297
  %v1299 = vlaneseq
  %v1300 = vshrl.u32 %v1299, 7
  %v1301 = vsub.s32 0, %v1300
  %v1302 = vrot.slane %v1242, %v1301
  %v1303 = vlaneseq
  %v1304 = vshrl.u32 %v1303, 7
  %v1305 = vsub.s32 0, %v1304
  %v1306 = vrot.slane %v1256, %v1305
  %v1307 = vlaneseq
  %v1308 = vshrl.u32 %v1307, 7
  %v1309 = vsub.s32 0, %v1308
  %v1310 = vrot.slane %v1258, %v1309
  %v1311 = vlaneseq
  %v1312 = vshrl.u32 %v1311, 7
  %v1313 = vsub.s32 0, %v1312
  %v1314 = vrot.slane %v1260, %v1313
  %v1315 = vlaneseq
  %v1316 = vshrl.u32 %v1315, 7
  %v1317 = vsub.s32 0, %v1316
  %v1318 = vrot.slane %v1275, %v1317
  %v1319 = vlaneseq
  %v1320 = vshrl.u32 %v1319, 7
  %v1321 = vsub.s32 0, %v1320
  %v1322 = vrot.slane %v1282, %v1321
  %1323 = vset.pattern.permute.xlu0 0
  %1324 = vperm.xlu0 %1323, %v1286
  %v1325 = vpop.permute.xlu0 %1324
  %1327 = vset.pattern.permute.xlu0 0
  %1328 = vperm.xlu0 %1327, %v1290
  %v1329 = vpop.permute.xlu0 %1328
  %1331 = vset.pattern.permute.xlu0 0
  %1332 = vperm.xlu0 %1331, %v1294
  %v1333 = vpop.permute.xlu0 %1332
  %1335 = vset.pattern.permute.xlu0 0
  %1336 = vperm.xlu0 %1335, %v1298
  %v1337 = vpop.permute.xlu0 %1336
  %1339 = vset.pattern.permute.xlu0 0
  %1340 = vperm.xlu0 %1339, %v1302
  %v1341 = vpop.permute.xlu0 %1340
  %1343 = vset.pattern.permute.xlu0 0
  %1344 = vperm.xlu0 %1343, %v1306
  %v1345 = vpop.permute.xlu0 %1344
  %1347 = vset.pattern.permute.xlu0 0
  %1348 = vperm.xlu0 %1347, %v1310
  %v1349 = vpop.permute.xlu0 %1348
  %1351 = vset.pattern.permute.xlu0 0
  %1352 = vperm.xlu0 %1351, %v1314
  %v1353 = vpop.permute.xlu0 %1352
  %1355 = vset.pattern.permute.xlu0 0
  %1356 = vperm.xlu0 %1355, %v1318
  %v1357 = vpop.permute.xlu0 %1356
  %1359 = vset.pattern.permute.xlu0 0
  %1360 = vperm.xlu0 %1359, %v1322
  %v1361 = vpop.permute.xlu0 %1360
  %v1363 = vadd.f32 %v1198, %v1325
  %v1364 = vadd.f32 %v1199, %v1329
  %v1365 = vadd.f32 %v1200, %v1333
  %v1366 = vadd.f32 %v1201, %v1337
  %v1367 = vadd.f32 %v1202, %v1341
  %v1368 = vadd.f32 %v1203, %v1345
  %v1369 = vadd.f32 %v1204, %v1349
  %v1370 = vadd.f32 %v1205, %v1353
  %v1371 = vadd.f32 %v1206, %v1357
  %v1372 = vadd.f32 %v1207, %v1361
  %v1373 = vmax.f32 %v1363, 0.0
  %v1374 = vmax.f32 %v1364, 0.0
  %v1375 = vmax.f32 %v1365, 0.0
  %v1376 = vmax.f32 %v1366, 0.0
  %v1377 = vmax.f32 %v1367, 0.0
  %v1378 = vmax.f32 %v1368, 0.0
  %v1379 = vmax.f32 %v1369, 0.0
  %v1380 = vmax.f32 %v1370, 0.0
  %v1381 = vmax.f32 %v1371, 0.0
  %v1382 = vmax.f32 %v1372, 0.0
  %v1383 = vld [vmem:[%s3] sm:$0xff]
  %v1384 = vld [vmem:[%s3 + $0x8] sm:$0xff]
  %v1385 = vld [vmem:[%s3 + $0x10] sm:$0x3f]
  %v1386 = vld [vmem:[%s3 + $0x18] sm:$0xff]
  %v1387 = vld [vmem:[%s3 + $0x20] sm:$0xff]
  %v1388 = vld [vmem:[%s3 + $0x28] sm:$0x3f]
  %v1389 = vld [vmem:[%s3 + $0x30] sm:$0xff]
  %v1390 = vld [vmem:[%s3 + $0x38] sm:$0xff]
  %v1391 = vld [vmem:[%s3 + $0x40] sm:$0x3f]
  %v1392 = vld [vmem:[%s3 + $0x48] sm:$0xff]
  %v1393 = vld [vmem:[%s3 + $0x50] sm:$0xff]
  %v1394 = vld [vmem:[%s3 + $0x58] sm:$0x3f]
  %v1395 = vld [vmem:[%s3 + $0x60] sm:$0xff]
  %v1396 = vld [vmem:[%s3 + $0x68] sm:$0xff]
  %v1397 = vld [vmem:[%s3 + $0x70] sm:$0x3f]
  %v1398 = vld [vmem:[%s3 + $0x78] sm:$0xff]
  %v1399 = vld [vmem:[%s3 + $0x80] sm:$0xff]
  %v1400 = vld [vmem:[%s3 + $0x88] sm:$0x3f]
  %v1401 = vld [vmem:[%s3 + $0x90] sm:$0xff]
  %v1402 = vld [vmem:[%s3 + $0x98] sm:$0xff]
  %v1403 = vld [vmem:[%s3 + $0xa0] sm:$0x3f]
  %v1404 = vld [vmem:[%s3 + $0xa8] sm:$0xff]
  %v1405 = vld [vmem:[%s3 + $0xb0] sm:$0xff]
  %v1406 = vld [vmem:[%s3 + $0xb8] sm:$0x3f]
  %v1407 = vld [vmem:[%s3 + $0xc0] sm:$0xff]
  %v1408 = vld [vmem:[%s3 + $0xc8] sm:$0xff]
  %v1409 = vld [vmem:[%s3 + $0xd0] sm:$0x3f]
  %v1410 = vld [vmem:[%s3 + $0xd8] sm:$0xff]
  %v1411 = vld [vmem:[%s3 + $0xe0] sm:$0xff]
  %v1412 = vld [vmem:[%s3 + $0xe8] sm:$0x3f]
  %vm1413 = vcmask 179200
  %v1415 = vsel %vm1413, %v1373, 0
  %vm1417 = vcmask 1045504
  %v1419 = vsel %vm1417, %v1385, 0
  %1421 = vmatprep.subr.mxu0 0.0
  %1422 = vmatpush1.msra.mxu0 0.0
  %1423 = vmatprep.subr.mxu0 0.0
  %1424 = vmatpush1.msra.mxu0 0.0
  %1425 = vmatprep.subr.mxu0 0.0
  %1426 = vmatpush1.msra.mxu0 0.0
  %1427 = vmatprep.subr.mxu0 0.0
  %1428 = vmatpush1.msra.mxu0 0.0
  %1429 = vmatprep.subr.mxu0 0.0
  %1430 = vmatpush1.msra.mxu0 0.0
  %1431 = vmatprep.subr.mxu0 0.0
  %1432 = vmatpush1.msra.mxu0 0.0
  %1433 = vmatprep.subr.mxu0 0.0
  %1434 = vmatpush1.msra.mxu0 0.0
  %1435 = vmatprep.subr.mxu0 0.0
  %1436 = vmatpush1.msra.mxu0 0.0
  %1437 = vmatprep.subr.mxu0 0.0
  %1438 = vmatpush1.msra.mxu0 0.0
  %1439 = vmatprep.subr.mxu0 0.0
  %1440 = vmatpush1.msra.mxu0 0.0
  %1441 = vmatprep.subr.mxu0 0.0
  %1442 = vmatpush1.msra.mxu0 0.0
  %1443 = vmatprep.subr.mxu0 0.0
  %1444 = vmatpush1.msra.mxu0 0.0
  %1445 = vmatprep.subr.mxu0 0.0
  %1446 = vmatpush1.msra.mxu0 0.0
  %1447 = vmatprep.subr.mxu0 0.0
  %1448 = vmatpush1.msra.mxu0 %v1419
  %1449 = vmatprep.subr.mxu0 0.0
  %1450 = vmatpush1.msra.mxu0 %v1384
  %1451 = vmatprep.subr.mxu0 0.0
  %1452 = vmatpush1.msra.mxu0 %v1383
  %1453 = vmatprep.subr.mxu0 0.0
  %1454 = vmatpush2.msra.mxu0 0.0
  %1455 = vmatprep.subr.mxu0 0.0
  %1456 = vmatpush2.msra.mxu0 0.0
  %1457 = vmatprep.subr.mxu0 0.0
  %1458 = vmatpush2.msra.mxu0 0.0
  %1459 = vmatprep.subr.mxu0 0.0
  %1460 = vmatpush2.msra.mxu0 0.0
  %1461 = vmatprep.subr.mxu0 0.0
  %1462 = vmatpush2.msra.mxu0 0.0
  %1463 = vmatprep.subr.mxu0 0.0
  %1464 = vmatpush2.msra.mxu0 0.0
  %1465 = vmatprep.subr.mxu0 0.0
  %1466 = vmatpush2.msra.mxu0 0.0
  %1467 = vmatprep.subr.mxu0 0.0
  %1468 = vmatpush2.msra.mxu0 0.0
  %1469 = vmatprep.subr.mxu0 0.0
  %1470 = vmatpush2.msra.mxu0 0.0
  %1471 = vmatprep.subr.mxu0 0.0
  %1472 = vmatpush2.msra.mxu0 0.0
  %1473 = vmatprep.subr.mxu0 0.0
  %1474 = vmatpush2.msra.mxu0 0.0
  %1475 = vmatprep.subr.mxu0 0.0
  %1476 = vmatpush2.msra.mxu0 0.0
  %1477 = vmatprep.subr.mxu0 0.0
  %1478 = vmatpush2.msra.mxu0 0.0
  %1479 = vmatprep.subr.mxu0 0.0
  %1480 = vmatpush2.msra.mxu0 0.0
  %1481 = vmatprep.subr.mxu0 0.0
  %1482 = vmatpush2.msra.mxu0 0.0
  %1483 = vmatprep.subr.mxu0 0.0
  %1484 = vmatpush2.msra.mxu0 0.0
  %1485 = vmatprep.mubr.f32.mxu0 0.0
  %1486 = vmatmul.mubr.f32.gmra.mxu0 %v1415
  %v1487 = vpop.f32.mrf.mxu0
  %v1488 = vadd.f32 0.0, %v1487
  %v1489 = vpop.f32.mrf.mxu0
  %1490 = vdwg.mxu0
  %v1492 = vsel %vm1413, %v1374, 0
  %v1495 = vsel %vm1417, %v1388, 0
  %1497 = vmatprep.subr.mxu0 0.0
  %1498 = vmatpush1.msra.mxu0 0.0
  %1499 = vmatprep.subr.mxu0 0.0
  %1500 = vmatpush1.msra.mxu0 0.0
  %1501 = vmatprep.subr.mxu0 0.0
  %1502 = vmatpush1.msra.mxu0 0.0
  %1503 = vmatprep.subr.mxu0 0.0
  %1504 = vmatpush1.msra.mxu0 0.0
  %1505 = vmatprep.subr.mxu0 0.0
  %1506 = vmatpush1.msra.mxu0 0.0
  %1507 = vmatprep.subr.mxu0 0.0
  %1508 = vmatpush1.msra.mxu0 0.0
  %1509 = vmatprep.subr.mxu0 0.0
  %1510 = vmatpush1.msra.mxu0 0.0
  %1511 = vmatprep.subr.mxu0 0.0
  %1512 = vmatpush1.msra.mxu0 0.0
  %1513 = vmatprep.subr.mxu0 0.0
  %1514 = vmatpush1.msra.mxu0 0.0
  %1515 = vmatprep.subr.mxu0 0.0
  %1516 = vmatpush1.msra.mxu0 0.0
  %1517 = vmatprep.subr.mxu0 0.0
  %1518 = vmatpush1.msra.mxu0 0.0
  %1519 = vmatprep.subr.mxu0 0.0
  %1520 = vmatpush1.msra.mxu0 0.0
  %1521 = vmatprep.subr.mxu0 0.0
  %1522 = vmatpush1.msra.mxu0 0.0
  %1523 = vmatprep.subr.mxu0 0.0
  %1524 = vmatpush1.msra.mxu0 %v1495
  %1525 = vmatprep.subr.mxu0 0.0
  %1526 = vmatpush1.msra.mxu0 %v1387
  %1527 = vmatprep.subr.mxu0 0.0
  %1528 = vmatpush1.msra.mxu0 %v1386
  %1529 = vmatprep.subr.mxu0 0.0
  %1530 = vmatpush2.msra.mxu0 0.0
  %1531 = vmatprep.subr.mxu0 0.0
  %1532 = vmatpush2.msra.mxu0 0.0
  %1533 = vmatprep.subr.mxu0 0.0
  %1534 = vmatpush2.msra.mxu0 0.0
  %1535 = vmatprep.subr.mxu0 0.0
  %1536 = vmatpush2.msra.mxu0 0.0
  %1537 = vmatprep.subr.mxu0 0.0
  %1538 = vmatpush2.msra.mxu0 0.0
  %1539 = vmatprep.subr.mxu0 0.0
  %1540 = vmatpush2.msra.mxu0 0.0
  %1541 = vmatprep.subr.mxu0 0.0
  %1542 = vmatpush2.msra.mxu0 0.0
  %1543 = vmatprep.subr.mxu0 0.0
  %1544 = vmatpush2.msra.mxu0 0.0
  %1545 = vmatprep.subr.mxu0 0.0
  %1546 = vmatpush2.msra.mxu0 0.0
  %1547 = vmatprep.subr.mxu0 0.0
  %1548 = vmatpush2.msra.mxu0 0.0
  %1549 = vmatprep.subr.mxu0 0.0
  %1550 = vmatpush2.msra.mxu0 0.0
  %1551 = vmatprep.subr.mxu0 0.0
  %1552 = vmatpush2.msra.mxu0 0.0
  %1553 = vmatprep.subr.mxu0 0.0
  %1554 = vmatpush2.msra.mxu0 0.0
  %1555 = vmatprep.subr.mxu0 0.0
  %1556 = vmatpush2.msra.mxu0 0.0
  %1557 = vmatprep.subr.mxu0 0.0
  %1558 = vmatpush2.msra.mxu0 0.0
  %1559 = vmatprep.subr.mxu0 0.0
  %1560 = vmatpush2.msra.mxu0 0.0
  %1561 = vmatprep.mubr.f32.mxu0 0.0
  %1562 = vmatmul.mubr.f32.gmra.mxu0 %v1492
  %v1563 = vpop.f32.mrf.mxu0
  %v1564 = vadd.f32 0.0, %v1563
  %v1565 = vpop.f32.mrf.mxu0
  %1566 = vdwg.mxu0
  %v1568 = vsel %vm1413, %v1375, 0
  %v1571 = vsel %vm1417, %v1391, 0
  %1573 = vmatprep.subr.mxu0 0.0
  %1574 = vmatpush1.msra.mxu0 0.0
  %1575 = vmatprep.subr.mxu0 0.0
  %1576 = vmatpush1.msra.mxu0 0.0
  %1577 = vmatprep.subr.mxu0 0.0
  %1578 = vmatpush1.msra.mxu0 0.0
  %1579 = vmatprep.subr.mxu0 0.0
  %1580 = vmatpush1.msra.mxu0 0.0
  %1581 = vmatprep.subr.mxu0 0.0
  %1582 = vmatpush1.msra.mxu0 0.0
  %1583 = vmatprep.subr.mxu0 0.0
  %1584 = vmatpush1.msra.mxu0 0.0
  %1585 = vmatprep.subr.mxu0 0.0
  %1586 = vmatpush1.msra.mxu0 0.0
  %1587 = vmatprep.subr.mxu0 0.0
  %1588 = vmatpush1.msra.mxu0 0.0
  %1589 = vmatprep.subr.mxu0 0.0
  %1590 = vmatpush1.msra.mxu0 0.0
  %1591 = vmatprep.subr.mxu0 0.0
  %1592 = vmatpush1.msra.mxu0 0.0
  %1593 = vmatprep.subr.mxu0 0.0
  %1594 = vmatpush1.msra.mxu0 0.0
  %1595 = vmatprep.subr.mxu0 0.0
  %1596 = vmatpush1.msra.mxu0 0.0
  %1597 = vmatprep.subr.mxu0 0.0
  %1598 = vmatpush1.msra.mxu0 0.0
  %1599 = vmatprep.subr.mxu0 0.0
  %1600 = vmatpush1.msra.mxu0 %v1571
  %1601 = vmatprep.subr.mxu0 0.0
  %1602 = vmatpush1.msra.mxu0 %v1390
  %1603 = vmatprep.subr.mxu0 0.0
  %1604 = vmatpush1.msra.mxu0 %v1389
  %1605 = vmatprep.subr.mxu0 0.0
  %1606 = vmatpush2.msra.mxu0 0.0
  %1607 = vmatprep.subr.mxu0 0.0
  %1608 = vmatpush2.msra.mxu0 0.0
  %1609 = vmatprep.subr.mxu0 0.0
  %1610 = vmatpush2.msra.mxu0 0.0
  %1611 = vmatprep.subr.mxu0 0.0
  %1612 = vmatpush2.msra.mxu0 0.0
  %1613 = vmatprep.subr.mxu0 0.0
  %1614 = vmatpush2.msra.mxu0 0.0
  %1615 = vmatprep.subr.mxu0 0.0
  %1616 = vmatpush2.msra.mxu0 0.0
  %1617 = vmatprep.subr.mxu0 0.0
  %1618 = vmatpush2.msra.mxu0 0.0
  %1619 = vmatprep.subr.mxu0 0.0
  %1620 = vmatpush2.msra.mxu0 0.0
  %1621 = vmatprep.subr.mxu0 0.0
  %1622 = vmatpush2.msra.mxu0 0.0
  %1623 = vmatprep.subr.mxu0 0.0
  %1624 = vmatpush2.msra.mxu0 0.0
  %1625 = vmatprep.subr.mxu0 0.0
  %1626 = vmatpush2.msra.mxu0 0.0
  %1627 = vmatprep.subr.mxu0 0.0
  %1628 = vmatpush2.msra.mxu0 0.0
  %1629 = vmatprep.subr.mxu0 0.0
  %1630 = vmatpush2.msra.mxu0 0.0
  %1631 = vmatprep.subr.mxu0 0.0
  %1632 = vmatpush2.msra.mxu0 0.0
  %1633 = vmatprep.subr.mxu0 0.0
  %1634 = vmatpush2.msra.mxu0 0.0
  %1635 = vmatprep.subr.mxu0 0.0
  %1636 = vmatpush2.msra.mxu0 0.0
  %1637 = vmatprep.mubr.f32.mxu0 0.0
  %1638 = vmatmul.mubr.f32.gmra.mxu0 %v1568
  %v1639 = vpop.f32.mrf.mxu0
  %v1640 = vadd.f32 0.0, %v1639
  %v1641 = vpop.f32.mrf.mxu0
  %1642 = vdwg.mxu0
  %v1644 = vsel %vm1413, %v1376, 0
  %v1647 = vsel %vm1417, %v1394, 0
  %1649 = vmatprep.subr.mxu0 0.0
  %1650 = vmatpush1.msra.mxu0 0.0
  %1651 = vmatprep.subr.mxu0 0.0
  %1652 = vmatpush1.msra.mxu0 0.0
  %1653 = vmatprep.subr.mxu0 0.0
  %1654 = vmatpush1.msra.mxu0 0.0
  %1655 = vmatprep.subr.mxu0 0.0
  %1656 = vmatpush1.msra.mxu0 0.0
  %1657 = vmatprep.subr.mxu0 0.0
  %1658 = vmatpush1.msra.mxu0 0.0
  %1659 = vmatprep.subr.mxu0 0.0
  %1660 = vmatpush1.msra.mxu0 0.0
  %1661 = vmatprep.subr.mxu0 0.0
  %1662 = vmatpush1.msra.mxu0 0.0
  %1663 = vmatprep.subr.mxu0 0.0
  %1664 = vmatpush1.msra.mxu0 0.0
  %1665 = vmatprep.subr.mxu0 0.0
  %1666 = vmatpush1.msra.mxu0 0.0
  %1667 = vmatprep.subr.mxu0 0.0
  %1668 = vmatpush1.msra.mxu0 0.0
  %1669 = vmatprep.subr.mxu0 0.0
  %1670 = vmatpush1.msra.mxu0 0.0
  %1671 = vmatprep.subr.mxu0 0.0
  %1672 = vmatpush1.msra.mxu0 0.0
  %1673 = vmatprep.subr.mxu0 0.0
  %1674 = vmatpush1.msra.mxu0 0.0
  %1675 = vmatprep.subr.mxu0 0.0
  %1676 = vmatpush1.msra.mxu0 %v1647
  %1677 = vmatprep.subr.mxu0 0.0
  %1678 = vmatpush1.msra.mxu0 %v1393
  %1679 = vmatprep.subr.mxu0 0.0
  %1680 = vmatpush1.msra.mxu0 %v1392
  %1681 = vmatprep.subr.mxu0 0.0
  %1682 = vmatpush2.msra.mxu0 0.0
  %1683 = vmatprep.subr.mxu0 0.0
  %1684 = vmatpush2.msra.mxu0 0.0
  %1685 = vmatprep.subr.mxu0 0.0
  %1686 = vmatpush2.msra.mxu0 0.0
  %1687 = vmatprep.subr.mxu0 0.0
  %1688 = vmatpush2.msra.mxu0 0.0
  %1689 = vmatprep.subr.mxu0 0.0
  %1690 = vmatpush2.msra.mxu0 0.0
  %1691 = vmatprep.subr.mxu0 0.0
  %1692 = vmatpush2.msra.mxu0 0.0
  %1693 = vmatprep.subr.mxu0 0.0
  %1694 = vmatpush2.msra.mxu0 0.0
  %1695 = vmatprep.subr.mxu0 0.0
  %1696 = vmatpush2.msra.mxu0 0.0
  %1697 = vmatprep.subr.mxu0 0.0
  %1698 = vmatpush2.msra.mxu0 0.0
  %1699 = vmatprep.subr.mxu0 0.0
  %1700 = vmatpush2.msra.mxu0 0.0
  %1701 = vmatprep.subr.mxu0 0.0
  %1702 = vmatpush2.msra.mxu0 0.0
  %1703 = vmatprep.subr.mxu0 0.0
  %1704 = vmatpush2.msra.mxu0 0.0
  %1705 = vmatprep.subr.mxu0 0.0
  %1706 = vmatpush2.msra.mxu0 0.0
  %1707 = vmatprep.subr.mxu0 0.0
  %1708 = vmatpush2.msra.mxu0 0.0
  %1709 = vmatprep.subr.mxu0 0.0
  %1710 = vmatpush2.msra.mxu0 0.0
  %1711 = vmatprep.subr.mxu0 0.0
  %1712 = vmatpush2.msra.mxu0 0.0
  %1713 = vmatprep.mubr.f32.mxu0 0.0
  %1714 = vmatmul.mubr.f32.gmra.mxu0 %v1644
  %v1715 = vpop.f32.mrf.mxu0
  %v1716 = vadd.f32 0.0, %v1715
  %v1717 = vpop.f32.mrf.mxu0
  %1718 = vdwg.mxu0
  %v1720 = vsel %vm1413, %v1377, 0
  %v1723 = vsel %vm1417, %v1397, 0
  %1725 = vmatprep.subr.mxu0 0.0
  %1726 = vmatpush1.msra.mxu0 0.0
  %1727 = vmatprep.subr.mxu0 0.0
  %1728 = vmatpush1.msra.mxu0 0.0
  %1729 = vmatprep.subr.mxu0 0.0
  %1730 = vmatpush1.msra.mxu0 0.0
  %1731 = vmatprep.subr.mxu0 0.0
  %1732 = vmatpush1.msra.mxu0 0.0
  %1733 = vmatprep.subr.mxu0 0.0
  %1734 = vmatpush1.msra.mxu0 0.0
  %1735 = vmatprep.subr.mxu0 0.0
  %1736 = vmatpush1.msra.mxu0 0.0
  %1737 = vmatprep.subr.mxu0 0.0
  %1738 = vmatpush1.msra.mxu0 0.0
  %1739 = vmatprep.subr.mxu0 0.0
  %1740 = vmatpush1.msra.mxu0 0.0
  %1741 = vmatprep.subr.mxu0 0.0
  %1742 = vmatpush1.msra.mxu0 0.0
  %1743 = vmatprep.subr.mxu0 0.0
  %1744 = vmatpush1.msra.mxu0 0.0
  %1745 = vmatprep.subr.mxu0 0.0
  %1746 = vmatpush1.msra.mxu0 0.0
  %1747 = vmatprep.subr.mxu0 0.0
  %1748 = vmatpush1.msra.mxu0 0.0
  %1749 = vmatprep.subr.mxu0 0.0
  %1750 = vmatpush1.msra.mxu0 0.0
  %1751 = vmatprep.subr.mxu0 0.0
  %1752 = vmatpush1.msra.mxu0 %v1723
  %1753 = vmatprep.subr.mxu0 0.0
  %1754 = vmatpush1.msra.mxu0 %v1396
  %1755 = vmatprep.subr.mxu0 0.0
  %1756 = vmatpush1.msra.mxu0 %v1395
  %1757 = vmatprep.subr.mxu0 0.0
  %1758 = vmatpush2.msra.mxu0 0.0
  %1759 = vmatprep.subr.mxu0 0.0
  %1760 = vmatpush2.msra.mxu0 0.0
  %1761 = vmatprep.subr.mxu0 0.0
  %1762 = vmatpush2.msra.mxu0 0.0
  %1763 = vmatprep.subr.mxu0 0.0
  %1764 = vmatpush2.msra.mxu0 0.0
  %1765 = vmatprep.subr.mxu0 0.0
  %1766 = vmatpush2.msra.mxu0 0.0
  %1767 = vmatprep.subr.mxu0 0.0
  %1768 = vmatpush2.msra.mxu0 0.0
  %1769 = vmatprep.subr.mxu0 0.0
  %1770 = vmatpush2.msra.mxu0 0.0
  %1771 = vmatprep.subr.mxu0 0.0
  %1772 = vmatpush2.msra.mxu0 0.0
  %1773 = vmatprep.subr.mxu0 0.0
  %1774 = vmatpush2.msra.mxu0 0.0
  %1775 = vmatprep.subr.mxu0 0.0
  %1776 = vmatpush2.msra.mxu0 0.0
  %1777 = vmatprep.subr.mxu0 0.0
  %1778 = vmatpush2.msra.mxu0 0.0
  %1779 = vmatprep.subr.mxu0 0.0
  %1780 = vmatpush2.msra.mxu0 0.0
  %1781 = vmatprep.subr.mxu0 0.0
  %1782 = vmatpush2.msra.mxu0 0.0
  %1783 = vmatprep.subr.mxu0 0.0
  %1784 = vmatpush2.msra.mxu0 0.0
  %1785 = vmatprep.subr.mxu0 0.0
  %1786 = vmatpush2.msra.mxu0 0.0
  %1787 = vmatprep.subr.mxu0 0.0
  %1788 = vmatpush2.msra.mxu0 0.0
  %1789 = vmatprep.mubr.f32.mxu0 0.0
  %1790 = vmatmul.mubr.f32.gmra.mxu0 %v1720
  %v1791 = vpop.f32.mrf.mxu0
  %v1792 = vadd.f32 0.0, %v1791
  %v1793 = vpop.f32.mrf.mxu0
  %1794 = vdwg.mxu0
  %v1796 = vsel %vm1413, %v1378, 0
  %v1799 = vsel %vm1417, %v1400, 0
  %1801 = vmatprep.subr.mxu0 0.0
  %1802 = vmatpush1.msra.mxu0 0.0
  %1803 = vmatprep.subr.mxu0 0.0
  %1804 = vmatpush1.msra.mxu0 0.0
  %1805 = vmatprep.subr.mxu0 0.0
  %1806 = vmatpush1.msra.mxu0 0.0
  %1807 = vmatprep.subr.mxu0 0.0
  %1808 = vmatpush1.msra.mxu0 0.0
  %1809 = vmatprep.subr.mxu0 0.0
  %1810 = vmatpush1.msra.mxu0 0.0
  %1811 = vmatprep.subr.mxu0 0.0
  %1812 = vmatpush1.msra.mxu0 0.0
  %1813 = vmatprep.subr.mxu0 0.0
  %1814 = vmatpush1.msra.mxu0 0.0
  %1815 = vmatprep.subr.mxu0 0.0
  %1816 = vmatpush1.msra.mxu0 0.0
  %1817 = vmatprep.subr.mxu0 0.0
  %1818 = vmatpush1.msra.mxu0 0.0
  %1819 = vmatprep.subr.mxu0 0.0
  %1820 = vmatpush1.msra.mxu0 0.0
  %1821 = vmatprep.subr.mxu0 0.0
  %1822 = vmatpush1.msra.mxu0 0.0
  %1823 = vmatprep.subr.mxu0 0.0
  %1824 = vmatpush1.msra.mxu0 0.0
  %1825 = vmatprep.subr.mxu0 0.0
  %1826 = vmatpush1.msra.mxu0 0.0
  %1827 = vmatprep.subr.mxu0 0.0
  %1828 = vmatpush1.msra.mxu0 %v1799
  %1829 = vmatprep.subr.mxu0 0.0
  %1830 = vmatpush1.msra.mxu0 %v1399
  %1831 = vmatprep.subr.mxu0 0.0
  %1832 = vmatpush1.msra.mxu0 %v1398
  %1833 = vmatprep.subr.mxu0 0.0
  %1834 = vmatpush2.msra.mxu0 0.0
  %1835 = vmatprep.subr.mxu0 0.0
  %1836 = vmatpush2.msra.mxu0 0.0
  %1837 = vmatprep.subr.mxu0 0.0
  %1838 = vmatpush2.msra.mxu0 0.0
  %1839 = vmatprep.subr.mxu0 0.0
  %1840 = vmatpush2.msra.mxu0 0.0
  %1841 = vmatprep.subr.mxu0 0.0
  %1842 = vmatpush2.msra.mxu0 0.0
  %1843 = vmatprep.subr.mxu0 0.0
  %1844 = vmatpush2.msra.mxu0 0.0
  %1845 = vmatprep.subr.mxu0 0.0
  %1846 = vmatpush2.msra.mxu0 0.0
  %1847 = vmatprep.subr.mxu0 0.0
  %1848 = vmatpush2.msra.mxu0 0.0
  %1849 = vmatprep.subr.mxu0 0.0
  %1850 = vmatpush2.msra.mxu0 0.0
  %1851 = vmatprep.subr.mxu0 0.0
  %1852 = vmatpush2.msra.mxu0 0.0
  %1853 = vmatprep.subr.mxu0 0.0
  %1854 = vmatpush2.msra.mxu0 0.0
  %1855 = vmatprep.subr.mxu0 0.0
  %1856 = vmatpush2.msra.mxu0 0.0
  %1857 = vmatprep.subr.mxu0 0.0
  %1858 = vmatpush2.msra.mxu0 0.0
  %1859 = vmatprep.subr.mxu0 0.0
  %1860 = vmatpush2.msra.mxu0 0.0
  %1861 = vmatprep.subr.mxu0 0.0
  %1862 = vmatpush2.msra.mxu0 0.0
  %1863 = vmatprep.subr.mxu0 0.0
  %1864 = vmatpush2.msra.mxu0 0.0
  %1865 = vmatprep.mubr.f32.mxu0 0.0
  %1866 = vmatmul.mubr.f32.gmra.mxu0 %v1796
  %v1867 = vpop.f32.mrf.mxu0
  %v1868 = vadd.f32 0.0, %v1867
  %v1869 = vpop.f32.mrf.mxu0
  %1870 = vdwg.mxu0
  %v1872 = vsel %vm1413, %v1379, 0
  %v1875 = vsel %vm1417, %v1403, 0
  %1877 = vmatprep.subr.mxu0 0.0
  %1878 = vmatpush1.msra.mxu0 0.0
  %1879 = vmatprep.subr.mxu0 0.0
  %1880 = vmatpush1.msra.mxu0 0.0
  %1881 = vmatprep.subr.mxu0 0.0
  %1882 = vmatpush1.msra.mxu0 0.0
  %1883 = vmatprep.subr.mxu0 0.0
  %1884 = vmatpush1.msra.mxu0 0.0
  %1885 = vmatprep.subr.mxu0 0.0
  %1886 = vmatpush1.msra.mxu0 0.0
  %1887 = vmatprep.subr.mxu0 0.0
  %1888 = vmatpush1.msra.mxu0 0.0
  %1889 = vmatprep.subr.mxu0 0.0
  %1890 = vmatpush1.msra.mxu0 0.0
  %1891 = vmatprep.subr.mxu0 0.0
  %1892 = vmatpush1.msra.mxu0 0.0
  %1893 = vmatprep.subr.mxu0 0.0
  %1894 = vmatpush1.msra.mxu0 0.0
  %1895 = vmatprep.subr.mxu0 0.0
  %1896 = vmatpush1.msra.mxu0 0.0
  %1897 = vmatprep.subr.mxu0 0.0
  %1898 = vmatpush1.msra.mxu0 0.0
  %1899 = vmatprep.subr.mxu0 0.0
  %1900 = vmatpush1.msra.mxu0 0.0
  %1901 = vmatprep.subr.mxu0 0.0
  %1902 = vmatpush1.msra.mxu0 0.0
  %1903 = vmatprep.subr.mxu0 0.0
  %1904 = vmatpush1.msra.mxu0 %v1875
  %1905 = vmatprep.subr.mxu0 0.0
  %1906 = vmatpush1.msra.mxu0 %v1402
  %1907 = vmatprep.subr.mxu0 0.0
  %1908 = vmatpush1.msra.mxu0 %v1401
  %1909 = vmatprep.subr.mxu0 0.0
  %1910 = vmatpush2.msra.mxu0 0.0
  %1911 = vmatprep.subr.mxu0 0.0
  %1912 = vmatpush2.msra.mxu0 0.0
  %1913 = vmatprep.subr.mxu0 0.0
  %1914 = vmatpush2.msra.mxu0 0.0
  %1915 = vmatprep.subr.mxu0 0.0
  %1916 = vmatpush2.msra.mxu0 0.0
  %1917 = vmatprep.subr.mxu0 0.0
  %1918 = vmatpush2.msra.mxu0 0.0
  %1919 = vmatprep.subr.mxu0 0.0
  %1920 = vmatpush2.msra.mxu0 0.0
  %1921 = vmatprep.subr.mxu0 0.0
  %1922 = vmatpush2.msra.mxu0 0.0
  %1923 = vmatprep.subr.mxu0 0.0
  %1924 = vmatpush2.msra.mxu0 0.0
  %1925 = vmatprep.subr.mxu0 0.0
  %1926 = vmatpush2.msra.mxu0 0.0
  %1927 = vmatprep.subr.mxu0 0.0
  %1928 = vmatpush2.msra.mxu0 0.0
  %1929 = vmatprep.subr.mxu0 0.0
  %1930 = vmatpush2.msra.mxu0 0.0
  %1931 = vmatprep.subr.mxu0 0.0
  %1932 = vmatpush2.msra.mxu0 0.0
  %1933 = vmatprep.subr.mxu0 0.0
  %1934 = vmatpush2.msra.mxu0 0.0
  %1935 = vmatprep.subr.mxu0 0.0
  %1936 = vmatpush2.msra.mxu0 0.0
  %1937 = vmatprep.subr.mxu0 0.0
  %1938 = vmatpush2.msra.mxu0 0.0
  %1939 = vmatprep.subr.mxu0 0.0
  %1940 = vmatpush2.msra.mxu0 0.0
  %1941 = vmatprep.mubr.f32.mxu0 0.0
  %1942 = vmatmul.mubr.f32.gmra.mxu0 %v1872
  %v1943 = vpop.f32.mrf.mxu0
  %v1944 = vadd.f32 0.0, %v1943
  %v1945 = vpop.f32.mrf.mxu0
  %1946 = vdwg.mxu0
  %v1948 = vsel %vm1413, %v1380, 0
  %v1951 = vsel %vm1417, %v1406, 0
  %1953 = vmatprep.subr.mxu0 0.0
  %1954 = vmatpush1.msra.mxu0 0.0
  %1955 = vmatprep.subr.mxu0 0.0
  %1956 = vmatpush1.msra.mxu0 0.0
  %1957 = vmatprep.subr.mxu0 0.0
  %1958 = vmatpush1.msra.mxu0 0.0
  %1959 = vmatprep.subr.mxu0 0.0
  %1960 = vmatpush1.msra.mxu0 0.0
  %1961 = vmatprep.subr.mxu0 0.0
  %1962 = vmatpush1.msra.mxu0 0.0
  %1963 = vmatprep.subr.mxu0 0.0
  %1964 = vmatpush1.msra.mxu0 0.0
  %1965 = vmatprep.subr.mxu0 0.0
  %1966 = vmatpush1.msra.mxu0 0.0
  %1967 = vmatprep.subr.mxu0 0.0
  %1968 = vmatpush1.msra.mxu0 0.0
  %1969 = vmatprep.subr.mxu0 0.0
  %1970 = vmatpush1.msra.mxu0 0.0
  %1971 = vmatprep.subr.mxu0 0.0
  %1972 = vmatpush1.msra.mxu0 0.0
  %1973 = vmatprep.subr.mxu0 0.0
  %1974 = vmatpush1.msra.mxu0 0.0
  %1975 = vmatprep.subr.mxu0 0.0
  %1976 = vmatpush1.msra.mxu0 0.0
  %1977 = vmatprep.subr.mxu0 0.0
  %1978 = vmatpush1.msra.mxu0 0.0
  %1979 = vmatprep.subr.mxu0 0.0
  %1980 = vmatpush1.msra.mxu0 %v1951
  %1981 = vmatprep.subr.mxu0 0.0
  %1982 = vmatpush1.msra.mxu0 %v1405
  %1983 = vmatprep.subr.mxu0 0.0
  %1984 = vmatpush1.msra.mxu0 %v1404
  %1985 = vmatprep.subr.mxu0 0.0
  %1986 = vmatpush2.msra.mxu0 0.0
  %1987 = vmatprep.subr.mxu0 0.0
  %1988 = vmatpush2.msra.mxu0 0.0
  %1989 = vmatprep.subr.mxu0 0.0
  %1990 = vmatpush2.msra.mxu0 0.0
  %1991 = vmatprep.subr.mxu0 0.0
  %1992 = vmatpush2.msra.mxu0 0.0
  %1993 = vmatprep.subr.mxu0 0.0
  %1994 = vmatpush2.msra.mxu0 0.0
  %1995 = vmatprep.subr.mxu0 0.0
  %1996 = vmatpush2.msra.mxu0 0.0
  %1997 = vmatprep.subr.mxu0 0.0
  %1998 = vmatpush2.msra.mxu0 0.0
  %1999 = vmatprep.subr.mxu0 0.0
  %2000 = vmatpush2.msra.mxu0 0.0
  %2001 = vmatprep.subr.mxu0 0.0
  %2002 = vmatpush2.msra.mxu0 0.0
  %2003 = vmatprep.subr.mxu0 0.0
  %2004 = vmatpush2.msra.mxu0 0.0
  %2005 = vmatprep.subr.mxu0 0.0
  %2006 = vmatpush2.msra.mxu0 0.0
  %2007 = vmatprep.subr.mxu0 0.0
  %2008 = vmatpush2.msra.mxu0 0.0
  %2009 = vmatprep.subr.mxu0 0.0
  %2010 = vmatpush2.msra.mxu0 0.0
  %2011 = vmatprep.subr.mxu0 0.0
  %2012 = vmatpush2.msra.mxu0 0.0
  %2013 = vmatprep.subr.mxu0 0.0
  %2014 = vmatpush2.msra.mxu0 0.0
  %2015 = vmatprep.subr.mxu0 0.0
  %2016 = vmatpush2.msra.mxu0 0.0
  %2017 = vmatprep.mubr.f32.mxu0 0.0
  %2018 = vmatmul.mubr.f32.gmra.mxu0 %v1948
  %v2019 = vpop.f32.mrf.mxu0
  %v2020 = vadd.f32 0.0, %v2019
  %v2021 = vpop.f32.mrf.mxu0
  %2022 = vdwg.mxu0
  %v2024 = vsel %vm1413, %v1381, 0
  %v2027 = vsel %vm1417, %v1409, 0
  %2029 = vmatprep.subr.mxu0 0.0
  %2030 = vmatpush1.msra.mxu0 0.0
  %2031 = vmatprep.subr.mxu0 0.0
  %2032 = vmatpush1.msra.mxu0 0.0
  %2033 = vmatprep.subr.mxu0 0.0
  %2034 = vmatpush1.msra.mxu0 0.0
  %2035 = vmatprep.subr.mxu0 0.0
  %2036 = vmatpush1.msra.mxu0 0.0
  %2037 = vmatprep.subr.mxu0 0.0
  %2038 = vmatpush1.msra.mxu0 0.0
  %2039 = vmatprep.subr.mxu0 0.0
  %2040 = vmatpush1.msra.mxu0 0.0
  %2041 = vmatprep.subr.mxu0 0.0
  %2042 = vmatpush1.msra.mxu0 0.0
  %2043 = vmatprep.subr.mxu0 0.0
  %2044 = vmatpush1.msra.mxu0 0.0
  %2045 = vmatprep.subr.mxu0 0.0
  %2046 = vmatpush1.msra.mxu0 0.0
  %2047 = vmatprep.subr.mxu0 0.0
  %2048 = vmatpush1.msra.mxu0 0.0
  %2049 = vmatprep.subr.mxu0 0.0
  %2050 = vmatpush1.msra.mxu0 0.0
  %2051 = vmatprep.subr.mxu0 0.0
  %2052 = vmatpush1.msra.mxu0 0.0
  %2053 = vmatprep.subr.mxu0 0.0
  %2054 = vmatpush1.msra.mxu0 0.0
  %2055 = vmatprep.subr.mxu0 0.0
  %2056 = vmatpush1.msra.mxu0 %v2027
  %2057 = vmatprep.subr.mxu0 0.0
  %2058 = vmatpush1.msra.mxu0 %v1408
  %2059 = vmatprep.subr.mxu0 0.0
  %2060 = vmatpush1.msra.mxu0 %v1407
  %2061 = vmatprep.subr.mxu0 0.0
  %2062 = vmatpush2.msra.mxu0 0.0
  %2063 = vmatprep.subr.mxu0 0.0
  %2064 = vmatpush2.msra.mxu0 0.0
  %2065 = vmatprep.subr.mxu0 0.0
  %2066 = vmatpush2.msra.mxu0 0.0
  %2067 = vmatprep.subr.mxu0 0.0
  %2068 = vmatpush2.msra.mxu0 0.0
  %2069 = vmatprep.subr.mxu0 0.0
  %2070 = vmatpush2.msra.mxu0 0.0
  %2071 = vmatprep.subr.mxu0 0.0
  %2072 = vmatpush2.msra.mxu0 0.0
  %2073 = vmatprep.subr.mxu0 0.0
  %2074 = vmatpush2.msra.mxu0 0.0
  %2075 = vmatprep.subr.mxu0 0.0
  %2076 = vmatpush2.msra.mxu0 0.0
  %2077 = vmatprep.subr.mxu0 0.0
  %2078 = vmatpush2.msra.mxu0 0.0
  %2079 = vmatprep.subr.mxu0 0.0
  %2080 = vmatpush2.msra.mxu0 0.0
  %2081 = vmatprep.subr.mxu0 0.0
  %2082 = vmatpush2.msra.mxu0 0.0
  %2083 = vmatprep.subr.mxu0 0.0
  %2084 = vmatpush2.msra.mxu0 0.0
  %2085 = vmatprep.subr.mxu0 0.0
  %2086 = vmatpush2.msra.mxu0 0.0
  %2087 = vmatprep.subr.mxu0 0.0
  %2088 = vmatpush2.msra.mxu0 0.0
  %2089 = vmatprep.subr.mxu0 0.0
  %2090 = vmatpush2.msra.mxu0 0.0
  %2091 = vmatprep.subr.mxu0 0.0
  %2092 = vmatpush2.msra.mxu0 0.0
  %2093 = vmatprep.mubr.f32.mxu0 0.0
  %2094 = vmatmul.mubr.f32.gmra.mxu0 %v2024
  %v2095 = vpop.f32.mrf.mxu0
  %v2096 = vadd.f32 0.0, %v2095
  %v2097 = vpop.f32.mrf.mxu0
  %2098 = vdwg.mxu0
  %v2100 = vsel %vm1413, %v1382, 0
  %v2103 = vsel %vm1417, %v1412, 0
  %2105 = vmatprep.subr.mxu0 0.0
  %2106 = vmatpush1.msra.mxu0 0.0
  %2107 = vmatprep.subr.mxu0 0.0
  %2108 = vmatpush1.msra.mxu0 0.0
  %2109 = vmatprep.subr.mxu0 0.0
  %2110 = vmatpush1.msra.mxu0 0.0
  %2111 = vmatprep.subr.mxu0 0.0
  %2112 = vmatpush1.msra.mxu0 0.0
  %2113 = vmatprep.subr.mxu0 0.0
  %2114 = vmatpush1.msra.mxu0 0.0
  %2115 = vmatprep.subr.mxu0 0.0
  %2116 = vmatpush1.msra.mxu0 0.0
  %2117 = vmatprep.subr.mxu0 0.0
  %2118 = vmatpush1.msra.mxu0 0.0
  %2119 = vmatprep.subr.mxu0 0.0
  %2120 = vmatpush1.msra.mxu0 0.0
  %2121 = vmatprep.subr.mxu0 0.0
  %2122 = vmatpush1.msra.mxu0 0.0
  %2123 = vmatprep.subr.mxu0 0.0
  %2124 = vmatpush1.msra.mxu0 0.0
  %2125 = vmatprep.subr.mxu0 0.0
  %2126 = vmatpush1.msra.mxu0 0.0
  %2127 = vmatprep.subr.mxu0 0.0
  %2128 = vmatpush1.msra.mxu0 0.0
  %2129 = vmatprep.subr.mxu0 0.0
  %2130 = vmatpush1.msra.mxu0 0.0
  %2131 = vmatprep.subr.mxu0 0.0
  %2132 = vmatpush1.msra.mxu0 %v2103
  %2133 = vmatprep.subr.mxu0 0.0
  %2134 = vmatpush1.msra.mxu0 %v1411
  %2135 = vmatprep.subr.mxu0 0.0
  %2136 = vmatpush1.msra.mxu0 %v1410
  %2137 = vmatprep.subr.mxu0 0.0
  %2138 = vmatpush2.msra.mxu0 0.0
  %2139 = vmatprep.subr.mxu0 0.0
  %2140 = vmatpush2.msra.mxu0 0.0
  %2141 = vmatprep.subr.mxu0 0.0
  %2142 = vmatpush2.msra.mxu0 0.0
  %2143 = vmatprep.subr.mxu0 0.0
  %2144 = vmatpush2.msra.mxu0 0.0
  %2145 = vmatprep.subr.mxu0 0.0
  %2146 = vmatpush2.msra.mxu0 0.0
  %2147 = vmatprep.subr.mxu0 0.0
  %2148 = vmatpush2.msra.mxu0 0.0
  %2149 = vmatprep.subr.mxu0 0.0
  %2150 = vmatpush2.msra.mxu0 0.0
  %2151 = vmatprep.subr.mxu0 0.0
  %2152 = vmatpush2.msra.mxu0 0.0
  %2153 = vmatprep.subr.mxu0 0.0
  %2154 = vmatpush2.msra.mxu0 0.0
  %2155 = vmatprep.subr.mxu0 0.0
  %2156 = vmatpush2.msra.mxu0 0.0
  %2157 = vmatprep.subr.mxu0 0.0
  %2158 = vmatpush2.msra.mxu0 0.0
  %2159 = vmatprep.subr.mxu0 0.0
  %2160 = vmatpush2.msra.mxu0 0.0
  %2161 = vmatprep.subr.mxu0 0.0
  %2162 = vmatpush2.msra.mxu0 0.0
  %2163 = vmatprep.subr.mxu0 0.0
  %2164 = vmatpush2.msra.mxu0 0.0
  %2165 = vmatprep.subr.mxu0 0.0
  %2166 = vmatpush2.msra.mxu0 0.0
  %2167 = vmatprep.subr.mxu0 0.0
  %2168 = vmatpush2.msra.mxu0 0.0
  %2169 = vmatprep.mubr.f32.mxu0 0.0
  %2170 = vmatmul.mubr.f32.gmra.mxu0 %v2100
  %v2171 = vpop.f32.mrf.mxu0
  %v2172 = vadd.f32 0.0, %v2171
  %v2173 = vpop.f32.mrf.mxu0
  %2174 = vdwg.mxu0
  %v2175 = vadd.f32 %v1488, %v1564
  %v2176 = vadd.f32 %v2175, %v1640
  %v2177 = vadd.f32 %v2176, %v1716
  %v2178 = vadd.f32 %v2177, %v1792
  %v2179 = vadd.f32 %v2178, %v1868
  %v2180 = vadd.f32 %v2179, %v1944
  %v2181 = vadd.f32 %v2180, %v2020
  %v2182 = vadd.f32 %v2181, %v2096
  %v2183 = vadd.f32 %v2182, %v2172
  %v2184 = vld [vmem:[%s4] sm:$0x1]
  %v2186 = vlaneseq
  %v2187 = vshrl.u32 %v2186, 7
  %v2188 = vsub.s32 0, %v2187
  %v2189 = vrot.slane %v2184, %v2188
  %v2191 = vadd.f32 %v2183, %v2189
  %v2192 = vmax.f32 %v2191, 0.0
  %v2193 = vld [vmem:[%s5] sm:$0xff]
  %v2194 = vld [vmem:[%s5 + $0x8] sm:$0xff]
  %v2195 = vld [vmem:[%s5 + $0x10] sm:$0xff]
  %v2196 = vld [vmem:[%s5 + $0x18] sm:$0xff]
  %v2197 = vld [vmem:[%s5 + $0x20] sm:$0xff]
  %v2198 = vld [vmem:[%s5 + $0x28] sm:$0xff]
  %v2199 = vld [vmem:[%s5 + $0x30] sm:$0xff]
  %v2200 = vld [vmem:[%s5 + $0x38] sm:$0xff]
  %v2201 = vld [vmem:[%s5 + $0x40] sm:$0xff]
  %v2202 = vld [vmem:[%s5 + $0x48] sm:$0xff]
  %v2203 = vld [vmem:[%s5 + $0x50] sm:$0xff]
  %v2204 = vld [vmem:[%s5 + $0x58] sm:$0xff]
  %v2205 = vld [vmem:[%s5 + $0x60] sm:$0xff]
  %v2206 = vld [vmem:[%s5 + $0x68] sm:$0xff]
  %v2207 = vld [vmem:[%s5 + $0x70] sm:$0xff]
  %v2208 = vld [vmem:[%s5 + $0x78] sm:$0xff]
  %v2209 = vld [vmem:[%s5 + $0x80] sm:$0xff]
  %v2210 = vld [vmem:[%s5 + $0x88] sm:$0xff]
  %v2211 = vld [vmem:[%s5 + $0x90] sm:$0xff]
  %v2212 = vld [vmem:[%s5 + $0x98] sm:$0xff]
  %v2213 = vld [vmem:[%s5 + $0xa0] sm:$0xff]
  %v2214 = vld [vmem:[%s5 + $0xa8] sm:$0xff]
  %v2215 = vld [vmem:[%s5 + $0xb0] sm:$0xff]
  %v2216 = vld [vmem:[%s5 + $0xb8] sm:$0xff]
  %v2217 = vld [vmem:[%s5 + $0xc0] sm:$0xff]
  %v2218 = vld [vmem:[%s5 + $0xc8] sm:$0xff]
  %v2219 = vld [vmem:[%s5 + $0xd0] sm:$0xff]
  %v2220 = vld [vmem:[%s5 + $0xd8] sm:$0xff]
  %v2221 = vld [vmem:[%s5 + $0xe0] sm:$0xff]
  %v2222 = vld [vmem:[%s5 + $0xe8] sm:$0xff]
  %v2223 = vld [vmem:[%s5 + $0xf0] sm:$0xff]
  %v2224 = vld [vmem:[%s5 + $0xf8] sm:$0xff]
  %v2225 = vld [vmem:[%s6] sm:$0x3]
  %v2227 = vlaneseq
  %v2228 = vshrl.u32 %v2227, 7
  %v2229 = vsub.s32 0, %v2228
  %v2230 = vrot.slane %v2225, %v2229
  %v2231 = vlaneseq
  %v2232 = vshrl.u32 %v2231, 7
  %v2233 = vsub.s32 1, %v2232
  %v2234 = vrot.slane %v2225, %v2233
  %2237 = vmatprep.subr.mxu0 %v2224
  %2238 = vmatpush1.msra.mxu0 %v2223
  %2239 = vmatprep.subr.mxu0 %v2222
  %2240 = vmatpush1.msra.mxu0 %v2221
  %2241 = vmatprep.subr.mxu0 %v2220
  %2242 = vmatpush1.msra.mxu0 %v2219
  %2243 = vmatprep.subr.mxu0 %v2218
  %2244 = vmatpush1.msra.mxu0 %v2217
  %2245 = vmatprep.subr.mxu0 %v2216
  %2246 = vmatpush1.msra.mxu0 %v2215
  %2247 = vmatprep.subr.mxu0 %v2214
  %2248 = vmatpush1.msra.mxu0 %v2213
  %2249 = vmatprep.subr.mxu0 %v2212
  %2250 = vmatpush1.msra.mxu0 %v2211
  %2251 = vmatprep.subr.mxu0 %v2210
  %2252 = vmatpush1.msra.mxu0 %v2209
  %2253 = vmatprep.subr.mxu0 %v2208
  %2254 = vmatpush1.msra.mxu0 %v2207
  %2255 = vmatprep.subr.mxu0 %v2206
  %2256 = vmatpush1.msra.mxu0 %v2205
  %2257 = vmatprep.subr.mxu0 %v2204
  %2258 = vmatpush1.msra.mxu0 %v2203
  %2259 = vmatprep.subr.mxu0 %v2202
  %2260 = vmatpush1.msra.mxu0 %v2201
  %2261 = vmatprep.subr.mxu0 %v2200
  %2262 = vmatpush1.msra.mxu0 %v2199
  %2263 = vmatprep.subr.mxu0 %v2198
  %2264 = vmatpush1.msra.mxu0 %v2197
  %2265 = vmatprep.subr.mxu0 %v2196
  %2266 = vmatpush1.msra.mxu0 %v2195
  %2267 = vmatprep.subr.mxu0 %v2194
  %2268 = vmatpush1.msra.mxu0 %v2193
  %2269 = vmatprep.subr.mxu0 0.0
  %2270 = vmatpush2.msra.mxu0 0.0
  %2271 = vmatprep.subr.mxu0 0.0
  %2272 = vmatpush2.msra.mxu0 0.0
  %2273 = vmatprep.subr.mxu0 0.0
  %2274 = vmatpush2.msra.mxu0 0.0
  %2275 = vmatprep.subr.mxu0 0.0
  %2276 = vmatpush2.msra.mxu0 0.0
  %2277 = vmatprep.subr.mxu0 0.0
  %2278 = vmatpush2.msra.mxu0 0.0
  %2279 = vmatprep.subr.mxu0 0.0
  %2280 = vmatpush2.msra.mxu0 0.0
  %2281 = vmatprep.subr.mxu0 0.0
  %2282 = vmatpush2.msra.mxu0 0.0
  %2283 = vmatprep.subr.mxu0 0.0
  %2284 = vmatpush2.msra.mxu0 0.0
  %2285 = vmatprep.subr.mxu0 0.0
  %2286 = vmatpush2.msra.mxu0 0.0
  %2287 = vmatprep.subr.mxu0 0.0
  %2288 = vmatpush2.msra.mxu0 0.0
  %2289 = vmatprep.subr.mxu0 0.0
  %2290 = vmatpush2.msra.mxu0 0.0
  %2291 = vmatprep.subr.mxu0 0.0
  %2292 = vmatpush2.msra.mxu0 0.0
  %2293 = vmatprep.subr.mxu0 0.0
  %2294 = vmatpush2.msra.mxu0 0.0
  %2295 = vmatprep.subr.mxu0 0.0
  %2296 = vmatpush2.msra.mxu0 0.0
  %2297 = vmatprep.subr.mxu0 0.0
  %2298 = vmatpush2.msra.mxu0 0.0
  %2299 = vmatprep.subr.mxu0 0.0
  %2300 = vmatpush2.msra.mxu0 0.0
  %2301 = vmatprep.mubr.f32.mxu0 0.0
  %2302 = vmatmul.mubr.f32.gmra.mxu0 %v2192
  %v2303 = vpop.f32.mrf.mxu0
  %v2304 = vadd.f32 %v2230, %v2303
  %v2305 = vpop.f32.mrf.mxu0
  %v2306 = vadd.f32 %v2234, %v2305
  %2307 = vdwg.mxu0
  %v2308 = vmax.f32 %v2304, 0.0
  %v2309 = vmax.f32 %v2306, 0.0
  %v2310 = vld [vmem:[%s7] sm:$0xff]
  %v2311 = vld [vmem:[%s7 + $0x8] sm:$0xff]
  %v2312 = vld [vmem:[%s7 + $0x10] sm:$0xff]
  %v2313 = vld [vmem:[%s7 + $0x18] sm:$0xff]
  %v2314 = vld [vmem:[%s7 + $0x20] sm:$0xff]
  %v2315 = vld [vmem:[%s7 + $0x28] sm:$0xff]
  %v2316 = vld [vmem:[%s7 + $0x30] sm:$0xff]
  %v2317 = vld [vmem:[%s7 + $0x38] sm:$0xff]
  %v2318 = vld [vmem:[%s7 + $0x40] sm:$0xff]
  %v2319 = vld [vmem:[%s7 + $0x48] sm:$0xff]
  %v2320 = vld [vmem:[%s7 + $0x50] sm:$0xff]
  %v2321 = vld [vmem:[%s7 + $0x58] sm:$0xff]
  %v2322 = vld [vmem:[%s7 + $0x60] sm:$0xff]
  %v2323 = vld [vmem:[%s7 + $0x68] sm:$0xff]
  %v2324 = vld [vmem:[%s7 + $0x70] sm:$0xff]
  %v2325 = vld [vmem:[%s7 + $0x78] sm:$0xff]
  %v2326 = vld [vmem:[%s7 + $0x80] sm:$0xff]
  %v2327 = vld [vmem:[%s7 + $0x88] sm:$0xff]
  %v2328 = vld [vmem:[%s7 + $0x90] sm:$0xff]
  %v2329 = vld [vmem:[%s7 + $0x98] sm:$0xff]
  %v2330 = vld [vmem:[%s7 + $0xa0] sm:$0xff]
  %v2331 = vld [vmem:[%s7 + $0xa8] sm:$0xff]
  %v2332 = vld [vmem:[%s7 + $0xb0] sm:$0xff]
  %v2333 = vld [vmem:[%s7 + $0xb8] sm:$0xff]
  %v2334 = vld [vmem:[%s7 + $0xc0] sm:$0xff]
  %v2335 = vld [vmem:[%s7 + $0xc8] sm:$0xff]
  %v2336 = vld [vmem:[%s7 + $0xd0] sm:$0xff]
  %v2337 = vld [vmem:[%s7 + $0xd8] sm:$0xff]
  %v2338 = vld [vmem:[%s7 + $0xe0] sm:$0xff]
  %v2339 = vld [vmem:[%s7 + $0xe8] sm:$0xff]
  %v2340 = vld [vmem:[%s7 + $0xf0] sm:$0xff]
  %v2341 = vld [vmem:[%s7 + $0xf8] sm:$0xff]
  %v2342 = vld [vmem:[%s8] sm:$0x1]
  %v2344 = vlaneseq
  %v2345 = vshrl.u32 %v2344, 7
  %v2346 = vsub.s32 0, %v2345
  %v2347 = vrot.slane %v2342, %v2346
  %2349 = vmatprep.subr.mxu0 0.0
  %2350 = vmatpush1.msra.mxu0 %v2325
  %2351 = vmatprep.subr.mxu0 0.0
  %2352 = vmatpush1.msra.mxu0 %v2324
  %2353 = vmatprep.subr.mxu0 0.0
  %2354 = vmatpush1.msra.mxu0 %v2323
  %2355 = vmatprep.subr.mxu0 0.0
  %2356 = vmatpush1.msra.mxu0 %v2322
  %2357 = vmatprep.subr.mxu0 0.0
  %2358 = vmatpush1.msra.mxu0 %v2321
  %2359 = vmatprep.subr.mxu0 0.0
  %2360 = vmatpush1.msra.mxu0 %v2320
  %2361 = vmatprep.subr.mxu0 0.0
  %2362 = vmatpush1.msra.mxu0 %v2319
  %2363 = vmatprep.subr.mxu0 0.0
  %2364 = vmatpush1.msra.mxu0 %v2318
  %2365 = vmatprep.subr.mxu0 0.0
  %2366 = vmatpush1.msra.mxu0 %v2317
  %2367 = vmatprep.subr.mxu0 0.0
  %2368 = vmatpush1.msra.mxu0 %v2316
  %2369 = vmatprep.subr.mxu0 0.0
  %2370 = vmatpush1.msra.mxu0 %v2315
  %2371 = vmatprep.subr.mxu0 0.0
  %2372 = vmatpush1.msra.mxu0 %v2314
  %2373 = vmatprep.subr.mxu0 0.0
  %2374 = vmatpush1.msra.mxu0 %v2313
  %2375 = vmatprep.subr.mxu0 0.0
  %2376 = vmatpush1.msra.mxu0 %v2312
  %2377 = vmatprep.subr.mxu0 0.0
  %2378 = vmatpush1.msra.mxu0 %v2311
  %2379 = vmatprep.subr.mxu0 0.0
  %2380 = vmatpush1.msra.mxu0 %v2310
  %2381 = vmatprep.subr.mxu0 0.0
  %2382 = vmatpush2.msra.mxu0 %v2341
  %2383 = vmatprep.subr.mxu0 0.0
  %2384 = vmatpush2.msra.mxu0 %v2340
  %2385 = vmatprep.subr.mxu0 0.0
  %2386 = vmatpush2.msra.mxu0 %v2339
  %2387 = vmatprep.subr.mxu0 0.0
  %2388 = vmatpush2.msra.mxu0 %v2338
  %2389 = vmatprep.subr.mxu0 0.0
  %2390 = vmatpush2.msra.mxu0 %v2337
  %2391 = vmatprep.subr.mxu0 0.0
  %2392 = vmatpush2.msra.mxu0 %v2336
  %2393 = vmatprep.subr.mxu0 0.0
  %2394 = vmatpush2.msra.mxu0 %v2335
  %2395 = vmatprep.subr.mxu0 0.0
  %2396 = vmatpush2.msra.mxu0 %v2334
  %2397 = vmatprep.subr.mxu0 0.0
  %2398 = vmatpush2.msra.mxu0 %v2333
  %2399 = vmatprep.subr.mxu0 0.0
  %2400 = vmatpush2.msra.mxu0 %v2332
  %2401 = vmatprep.subr.mxu0 0.0
  %2402 = vmatpush2.msra.mxu0 %v2331
  %2403 = vmatprep.subr.mxu0 0.0
  %2404 = vmatpush2.msra.mxu0 %v2330
  %2405 = vmatprep.subr.mxu0 0.0
  %2406 = vmatpush2.msra.mxu0 %v2329
  %2407 = vmatprep.subr.mxu0 0.0
  %2408 = vmatpush2.msra.mxu0 %v2328
  %2409 = vmatprep.subr.mxu0 0.0
  %2410 = vmatpush2.msra.mxu0 %v2327
  %2411 = vmatprep.subr.mxu0 0.0
  %2412 = vmatpush2.msra.mxu0 %v2326
  %2413 = vmatprep.mubr.f32.mxu0 %v2309
  %2414 = vmatmul.mubr.f32.gmra.mxu0 %v2308
  %v2415 = vpop.f32.mrf.mxu0
  %v2416 = vadd.f32 %v2347, %v2415
  %v2417 = vpop.f32.mrf.mxu0
  %2418 = vdwg.mxu0
  %2419 = vst [vmem:[%s9] sm:$0xff] %v2416
  // Predicated region
  $region38: #{net_forward.1} parent=0 // pred_check
    _
  $region39: #{net_forward.1} parent=0 // pred_check_branch
    %2421 = sbr.rel (0) target = $region41
  $region40: #{net_forward.1} parent=0 // pred_region
    _
  $region41: #{net_forward.1} parent=0 // pred_fallthru
    _
  // Predicated region
  $region42: #{net_forward.1} parent=0 // pred_check
    _
  $region43: #{net_forward.1} parent=0 // pred_check_branch
    %2423 = sbr.rel (0) target = $region45
  $region44: #{net_forward.1} parent=0 // pred_region
    _
  $region45: #{net_forward.1} parent=0 // pred_fallthru
    _

</llo_original>
